<compile_context>
chip_gen: v5e
topology: v5e:2x2
jax: 0.10.0
libtpu: 0.0.40
codegen_flags: <defaults>
</compile_context>

<pallas_src>
import functools

import jax
import jax.numpy as jnp
from jax.experimental import pallas as pl
from jax.experimental.pallas import tpu as pltpu


def _round_up(x, m):
    return (x + m - 1) // m * m


def _im2col_nchw_3x3_t(x):
    """3x3, stride 1, pad 1 im2col, transposed: [B,C,H,W] -> [C*9, B*H*W]."""
    # TODO(synk): fold the 9 taps into the kernel (shifted slices of x against
    # [C_in, C_ft] weight slices) to avoid the 9x patch blow-up at real H, W.
    B, C, H, W = x.shape
    xp = jnp.pad(x, ((0, 0), (0, 0), (1, 1), (1, 1)))
    taps = [xp[:, :, i:i + H, j:j + W] for i in range(3) for j in range(3)]
    p = jnp.stack(taps, axis=2)                 # [B, C, 9, H, W]
    p = p.transpose(1, 2, 0, 3, 4)              # [C, 9, B, H, W]
    return p.reshape(C * 9, B * H * W)          # K ordering = (c, tap)


def _fused_kernel(class_num, hw, p_ref, w_ref, b_ref, wh_ref, bh_ref,
                  out_ref, acc_ref):
    # p_ref:  [Kp, TR]     bf16  transposed im2col patch tile (rows in lanes)
    # w_ref:  [Kp, C_ft]   bf16  conv weight (resident across the grid)
    # b_ref:  [1,  C_ft]   f32   conv bias
    # wh_ref: [C_ft, Npad] f32   fused attribute+id head weights
    # bh_ref: [1,  Npad]   f32   fused head bias
    # out_ref:[B,  Npad]   f32   fused head outputs (written at last step)
    # acc_ref:[B,  C_ft]   f32   per-sample pooled-sum accumulator (VMEM)
    r = pl.program_id(0)
    B = acc_ref.shape[0]
    TR = p_ref.shape[1]

    @pl.when(r == 0)
    def _():
        acc_ref[...] = jnp.zeros_like(acc_ref)

    # Conv-as-matmul on the MXU, contracting axis 0 of both operands so the
    # streamed patch tile keeps its rows lane-dense.  bf16 x bf16 -> f32.
    y = jax.lax.dot_general(
        p_ref[...], w_ref[...],
        dimension_numbers=(((0,), (0,)), ((), ())),
        preferred_element_type=jnp.float32)                 # [TR, C_ft]
    y = jnp.maximum(y + b_ref[...], 0.0)                    # bias + ReLU (f32)

    # AdaptiveAvgPool2d((1,1)) accumulated as one bf16 MXU pass against an
    # exact 0/1 block-diagonal mask generated in-kernel.  Row-padding rows
    # (global index >= B*hw) fall outside every sample's [b*hw, (b+1)*hw)
    # range and thus never contribute.  1/hw scaling happens in the epilogue.
    gidx = r * TR + jax.lax.broadcasted_iota(jnp.int32, (B, TR), 1)
    lo = jax.lax.broadcasted_iota(jnp.int32, (B, TR), 0) * hw
    mask = ((gidx >= lo) & (gidx < lo + hw)).astype(jnp.bfloat16)
    acc_ref[...] += jnp.dot(mask, y.astype(jnp.bfloat16),
                            preferred_element_type=jnp.float32)

    @pl.when(r == pl.num_programs(0) - 1)
    def _():
        feat = acc_ref[...] * jnp.float32(1.0 / hw)         # f32 global avg
        # Fused heads: sigmoid attribute columns + activ='none' id columns,
        # computed in f32 directly off the f32 accumulator.
        logits = jnp.dot(feat, wh_ref[...],
                         preferred_element_type=jnp.float32) + bh_ref[...]
        col = jax.lax.broadcasted_iota(jnp.int32, logits.shape, 1)
        out_ref[...] = jnp.where(col < class_num,
                                 jax.nn.sigmoid(logits), logits)


def backbone_nfc_id_forward(x, conv_w, conv_b, w_attr, b_attr, w_id, b_id,
                            *, tile_rows=None):
    B, C_in, H, W = x.shape
    HW = H * W
    rows = B * HW
    K = C_in * 9
    C_ft = conv_w.shape[1]
    class_num = w_attr.shape[1]
    id_num = w_id.shape[1]

    if tile_rows is None:
        # Target ~4-8 pipelined row steps; even the 2048-row cap is only
        # ~128 KiB of bf16 patch tile per step, far below scoped VMEM limits.
        tile_rows = min(2048, max(128, _round_up(pl.cdiv(rows, 8), 128)))

    Kp = _round_up(K, 32)
    rows_p = _round_up(rows, tile_rows)
    n_row = rows_p // tile_rows

    # --- glue (no hot-path compute): bf16 cast first, then the 9x im2col
    # expansion in the transposed, lane-dense layout. ------------------------
    patches_t = _im2col_nchw_3x3_t(x.astype(jnp.bfloat16))      # [K, rows]
    patches_t = jnp.pad(patches_t, ((0, Kp - K), (0, rows_p - rows)))
    w_stem = jnp.pad(conv_w, ((0, Kp - K), (0, 0))).astype(jnp.bfloat16)
    b_stem = conv_b.reshape(1, C_ft).astype(jnp.float32)

    # Fused heads: class_0..class_{C-1} (sigmoid) and class_C (id, 'none')
    # as one lane-dense f32 weight slab; slice outputs in the wrapper.
    n_heads = class_num + id_num
    n_pad = _round_up(n_heads, 128)
    w_heads = jnp.concatenate([w_attr, w_id], axis=1)
    w_heads = jnp.pad(w_heads, ((0, 0), (0, n_pad - n_heads)))
    w_heads = w_heads.astype(jnp.float32)
    b_heads = jnp.concatenate(
        [b_attr.reshape(1, -1), b_id.reshape(1, -1)], axis=1)
    b_heads = jnp.pad(b_heads, ((0, 0), (0, n_pad - n_heads)))
    b_heads = b_heads.astype(jnp.float32)

    cost = pl.CostEstimate(
        flops=(2 * rows_p * Kp * C_ft            # conv-as-matmul
               + 2 * B * rows_p * C_ft           # pooling matmul
               + 2 * B * C_ft * n_pad),          # heads matmul
        transcendentals=B * n_pad,
        bytes_accessed=(patches_t.size * 2 + w_stem.size * 2 + b_stem.size * 4
                        + w_heads.size * 4 + b_heads.size * 4 + B * n_pad * 4))

    out = pl.pallas_call(
        functools.partial(_fused_kernel, class_num, HW),
        out_shape=jax.ShapeDtypeStruct((B, n_pad), jnp.float32),
        grid=(n_row,),
        in_specs=[
            pl.BlockSpec((Kp, tile_rows), lambda r: (0, r)),   # patch stream
            pl.BlockSpec((Kp, C_ft), lambda r: (0, 0)),        # stem weight
            pl.BlockSpec((1, C_ft), lambda r: (0, 0)),         # stem bias
            pl.BlockSpec((C_ft, n_pad), lambda r: (0, 0)),     # head weights
            pl.BlockSpec((1, n_pad), lambda r: (0, 0)),        # head bias
        ],
        out_specs=pl.BlockSpec((B, n_pad), lambda r: (0, 0)),
        scratch_shapes=[pltpu.VMEM((B, C_ft), jnp.float32)],
        compiler_params=pltpu.CompilerParams(
            dimension_semantics=("arbitrary",)),               # reduction axis
        cost_estimate=cost,
    )(patches_t, w_stem, b_stem, w_heads, b_heads)

    pred_label = out[:, :class_num]
    pred_id = out[:, class_num:n_heads]
    return pred_label, pred_id


def _reference_forward(x, conv_w, conv_b, w_attr, b_attr, w_id, b_id):
    """Pure-JAX f32 reference with identical semantics."""
    B = x.shape[0]
    patches = _im2col_nchw_3x3_t(x).T                          # [rows, K] f32
    y = jnp.maximum(patches @ conv_w + conv_b, 0.0)
    feat = y.reshape(B, -1, conv_w.shape[1]).mean(axis=1)
    pred_label = jax.nn.sigmoid(feat @ w_attr + b_attr)
    pred_id = feat @ w_id + b_id
    return pred_label, pred_id


if __name__ == "__main__":
    B, C_in, H, W = 2, 3, 16, 16
    class_num, id_num = 8, 16          # small synthetic attribute / id counts
    num_ftrs = 2048                    # resnet50 branch of Backbone_nFC_Id

    key = jax.random.PRNGKey(0)
    k_x, k_cw, k_wa, k_wi = jax.random.split(key, 4)

    x = jax.random.normal(k_x, (B, C_in, H, W), jnp.float32)

    # Deterministic synthetic parameters (shapes per module __init__).
    conv_w = 0.01 * jax.random.normal(k_cw, (C_in * 9, num_ftrs), jnp.float32)
    conv_b = jnp.zeros((1, num_ftrs), jnp.float32)
    # class_0..class_{class_num-1}: Linear(2048, 1) each -> fused [2048, C]
    w_attr = 0.001 * jax.random.normal(k_wa, (num_ftrs, class_num), jnp.float32)
    b_attr = jnp.zeros((1, class_num), jnp.float32)
    # class_{class_num}: Linear(2048, id_num), activ='none'
    w_id = 0.001 * jax.random.normal(k_wi, (num_ftrs, id_num), jnp.float32)
    b_id = jnp.zeros((1, id_num), jnp.float32)

    fwd = jax.jit(backbone_nfc_id_forward)
    pred_label, pred_id = fwd(x, conv_w, conv_b, w_attr, b_attr, w_id, b_id)
    jax.block_until_ready((pred_label, pred_id))

    assert pred_label.shape == (B, class_num)
    assert pred_id.shape == (B, id_num)
    assert bool(jnp.all((pred_label >= 0.0) & (pred_label <= 1.0)))

    # Loose-tolerance parity with the f32 reference (kernel uses bf16 MXU
    # inputs with f32 accumulation; heads run fully in f32).
    ref_label, ref_id = _reference_forward(
        x, conv_w, conv_b, w_attr, b_attr, w_id, b_id)
    assert bool(jnp.allclose(pred_label, ref_label, rtol=1e-1, atol=1e-2))
    assert bool(jnp.allclose(pred_id, ref_id, rtol=1e-1, atol=1e-2))

    print("KERNEL_OK")
</pallas_src>

<mosaic_0001>
module attributes {stable_mosaic.version = 11 : i64} {
  func.func @_fused_kernel(%arg0: i32, %arg1: memref<32x128xbf16, #tpu.memory_space<vmem>>, %arg2: memref<32x2048xbf16, #tpu.memory_space<vmem>>, %arg3: memref<1x2048xf32, #tpu.memory_space<vmem>>, %arg4: memref<2048x128xf32, #tpu.memory_space<vmem>>, %arg5: memref<1x128xf32, #tpu.memory_space<vmem>>, %arg6: memref<2x128xf32, #tpu.memory_space<vmem>>, %arg7: memref<2x2048xf32, #tpu.memory_space<vmem>>) attributes {dimension_semantics = [#tpu.dimension_semantics<arbitrary>], iteration_bounds = array<i64: 4>, scalar_prefetch = 0 : i64, scratch_operands = 1 : i64, tpu.core_type = #tpu.core_type<tc>, window_params = [{transform_indices = @transform_0, window_bounds = array<i64: 32, 128>}, {pipeline_mode = #tpu.pipeline_mode<synchronous>, transform_indices = @transform_1, window_bounds = array<i64: 32, 2048>}, {pipeline_mode = #tpu.pipeline_mode<synchronous>, transform_indices = @transform_2, window_bounds = array<i64: 1, 2048>}, {pipeline_mode = #tpu.pipeline_mode<synchronous>, transform_indices = @transform_3, window_bounds = array<i64: 2048, 128>}, {pipeline_mode = #tpu.pipeline_mode<synchronous>, transform_indices = @transform_4, window_bounds = array<i64: 1, 128>}, {pipeline_mode = #tpu.pipeline_mode<synchronous>, transform_indices = @transform_5, window_bounds = array<i64: 2, 128>}]} {
    %c0_i32 = arith.constant 0 : i32
    %0 = arith.cmpi eq, %arg0, %c0_i32 : i32
    %1 = arith.extui %0 : i1 to i32
    %c0_i32_0 = arith.constant 0 : i32
    %2 = arith.cmpi ne, %1, %c0_i32_0 : i32
    scf.if %2 {
      %cst_14 = arith.constant 0.000000e+00 : f32
      %34 = vector.broadcast %cst_14 : f32 to vector<2x2048xf32>
      %c0_15 = arith.constant 0 : index
      %c0_16 = arith.constant 0 : index
      %35 = vector.load %arg7[%c0_15, %c0_16] : memref<2x2048xf32, #tpu.memory_space<vmem>>, vector<2x2048xf32>
      tpu.vector_store %arg7[%c0_15, %c0_16], %34 {strides = array<i32>} : memref<2x2048xf32, #tpu.memory_space<vmem>>, vector<2x2048xf32>,
    } else {
    }
    %c0 = arith.constant 0 : index
    %c0_1 = arith.constant 0 : index
    %3 = vector.load %arg1[%c0, %c0_1] : memref<32x128xbf16, #tpu.memory_space<vmem>>, vector<32x128xbf16>
    %c0_2 = arith.constant 0 : index
    %c0_3 = arith.constant 0 : index
    %4 = vector.load %arg2[%c0_2, %c0_3] : memref<32x2048xbf16, #tpu.memory_space<vmem>>, vector<32x2048xbf16>
    %cst = arith.constant dense<0.000000e+00> : vector<128x2048xf32>
    %5 = tpu.matmul %3, %4, %cst {dimension_numbers = #tpu.dot_dimension_numbers<[0], [0], [1], [1], [0, 1, 1, 1], [], []>} : vector<32x128xbf16>, vector<32x2048xbf16>, vector<128x2048xf32> -> vector<128x2048xf32>
    %c0_4 = arith.constant 0 : index
    %c0_5 = arith.constant 0 : index
    %6 = vector.load %arg3[%c0_4, %c0_5] : memref<1x2048xf32, #tpu.memory_space<vmem>>, vector<1x2048xf32>
    %7 = vector.broadcast %6 : vector<1x2048xf32> to vector<128x2048xf32>
    %8 = arith.addf %5, %7 : vector<128x2048xf32>
    %cst_6 = arith.constant 0.000000e+00 : f32
    %9 = vector.broadcast %cst_6 : f32 to vector<128x2048xf32>
    %10 = arith.maximumf %8, %9 : vector<128x2048xf32>
    %c128_i32 = arith.constant 128 : i32
    %11 = arith.muli %arg0, %c128_i32 : i32
    %12 = tpu.iota {dimensions = array<i32: 1>} : vector<2x128xi32>
    %13 = vector.broadcast %11 : i32 to vector<2x128xi32>
    %14 = arith.addi %13, %12 : vector<2x128xi32>
    %15 = tpu.iota {dimensions = array<i32: 0>} : vector<2x128xi32>
    %c256_i32 = arith.constant 256 : i32
    %16 = vector.broadcast %c256_i32 : i32 to vector<2x128xi32>
    %17 = arith.muli %15, %16 : vector<2x128xi32>
    %18 = arith.cmpi sge, %14, %17 : vector<2x128xi32>
    %c256_i32_7 = arith.constant 256 : i32
    %19 = vector.broadcast %c256_i32_7 : i32 to vector<2x128xi32>
    %20 = arith.addi %17, %19 : vector<2x128xi32>
    %21 = arith.cmpi slt, %14, %20 : vector<2x128xi32>
    %22 = arith.andi %18, %21 : vector<2x128xi1>
    %23 = arith.extui %22 : vector<2x128xi1> to vector<2x128xi32>
    %24 = arith.sitofp %23 : vector<2x128xi32> to vector<2x128xf32>
    %25 = arith.truncf %24 : vector<2x128xf32> to vector<2x128xbf16>
    %c0_8 = arith.constant 0 : index
    %c0_9 = arith.constant 0 : index
    %26 = vector.load %arg7[%c0_8, %c0_9] : memref<2x2048xf32, #tpu.memory_space<vmem>>, vector<2x2048xf32>
    %27 = arith.truncf %10 : vector<128x2048xf32> to vector<128x2048xbf16>
    %cst_10 = arith.constant dense<0.000000e+00> : vector<2x2048xf32>
    %28 = tpu.matmul %25, %27, %cst_10 {dimension_numbers = #tpu.dot_dimension_numbers<[1], [0], [0], [1], [0, 0, 1, 1], [], []>} : vector<2x128xbf16>, vector<128x2048xbf16>, vector<2x2048xf32> -> vector<2x2048xf32>
    %29 = arith.addf %26, %28 : vector<2x2048xf32>
    %c0_11 = arith.constant 0 : index
    %c0_12 = arith.constant 0 : index
    %30 = vector.load %arg7[%c0_11, %c0_12] : memref<2x2048xf32, #tpu.memory_space<vmem>>, vector<2x2048xf32>
    tpu.vector_store %arg7[%c0_11, %c0_12], %29 {strides = array<i32>} : memref<2x2048xf32, #tpu.memory_space<vmem>>, vector<2x2048xf32>,
    %c3_i32 = arith.constant 3 : i32
    %31 = arith.cmpi eq, %arg0, %c3_i32 : i32
    %32 = arith.extui %31 : i1 to i32
    %c0_i32_13 = arith.constant 0 : i32
    %33 = arith.cmpi ne, %32, %c0_i32_13 : i32
    scf.if %33 {
      %c0_14 = arith.constant 0 : index
      %c0_15 = arith.constant 0 : index
      %34 = vector.load %arg7[%c0_14, %c0_15] : memref<2x2048xf32, #tpu.memory_space<vmem>>, vector<2x2048xf32>
      %cst_16 = arith.constant 3.906250e-03 : f32
      %35 = vector.broadcast %cst_16 : f32 to vector<2x2048xf32>
      %36 = arith.mulf %34, %35 : vector<2x2048xf32>
      %c0_17 = arith.constant 0 : index
      %c0_18 = arith.constant 0 : index
      %37 = vector.load %arg4[%c0_17, %c0_18] : memref<2048x128xf32, #tpu.memory_space<vmem>>, vector<2048x128xf32>
      %cst_19 = arith.constant dense<0.000000e+00> : vector<2x128xf32>
      %38 = tpu.matmul %36, %37, %cst_19 {dimension_numbers = #tpu.dot_dimension_numbers<[1], [0], [0], [1], [0, 0, 1, 1], [], []>} : vector<2x2048xf32>, vector<2048x128xf32>, vector<2x128xf32> -> vector<2x128xf32>
      %c0_20 = arith.constant 0 : index
      %c0_21 = arith.constant 0 : index
      %39 = vector.load %arg5[%c0_20, %c0_21] : memref<1x128xf32, #tpu.memory_space<vmem>>, vector<1x128xf32>
      %40 = vector.broadcast %39 : vector<1x128xf32> to vector<2x128xf32>
      %41 = arith.addf %38, %40 : vector<2x128xf32>
      %42 = tpu.iota {dimensions = array<i32: 1>} : vector<2x128xi32>
      %c8_i32 = arith.constant 8 : i32
      %43 = vector.broadcast %c8_i32 : i32 to vector<2x128xi32>
      %44 = arith.cmpi slt, %42, %43 : vector<2x128xi32>
      %45 = arith.negf %41 : vector<2x128xf32>
      %46 = math.exp %45 : vector<2x128xf32>
      %cst_22 = arith.constant 1.000000e+00 : f32
      %47 = vector.broadcast %cst_22 : f32 to vector<2x128xf32>
      %48 = arith.addf %47, %46 : vector<2x128xf32>
      %49 = arith.divf %47, %48 : vector<2x128xf32>
      %50 = arith.select %44, %49, %41 : vector<2x128xi1>, vector<2x128xf32>
      %c0_23 = arith.constant 0 : index
      %c0_24 = arith.constant 0 : index
      %51 = vector.load %arg6[%c0_23, %c0_24] : memref<2x128xf32, #tpu.memory_space<vmem>>, vector<2x128xf32>
      tpu.vector_store %arg6[%c0_23, %c0_24], %50 {strides = array<i32>} : memref<2x128xf32, #tpu.memory_space<vmem>>, vector<2x128xf32>,
    } else {
    }
    return
  }
  func.func @transform_0(%arg0: i32) -> (i32, i32) {
    %c0_i32 = arith.constant 0 : i32
    %c0_i32_0 = arith.constant 0 : i32
    return %c0_i32, %arg0 : i32, i32
  }
  func.func @transform_1(%arg0: i32) -> (i32, i32) {
    %c0_i32 = arith.constant 0 : i32
    %c0_i32_0 = arith.constant 0 : i32
    %c0_i32_1 = arith.constant 0 : i32
    return %c0_i32, %c0_i32_0 : i32, i32
  }
  func.func @transform_2(%arg0: i32) -> (i32, i32) {
    %c0_i32 = arith.constant 0 : i32
    %c0_i32_0 = arith.constant 0 : i32
    %c0_i32_1 = arith.constant 0 : i32
    return %c0_i32, %c0_i32_0 : i32, i32
  }
  func.func @transform_3(%arg0: i32) -> (i32, i32) {
    %c0_i32 = arith.constant 0 : i32
    %c0_i32_0 = arith.constant 0 : i32
    %c0_i32_1 = arith.constant 0 : i32
    return %c0_i32, %c0_i32_0 : i32, i32
  }
  func.func @transform_4(%arg0: i32) -> (i32, i32) {
    %c0_i32 = arith.constant 0 : i32
    %c0_i32_0 = arith.constant 0 : i32
    %c0_i32_1 = arith.constant 0 : i32
    return %c0_i32, %c0_i32_0 : i32, i32
  }
  func.func @transform_5(%arg0: i32) -> (i32, i32) {
    %c0_i32 = arith.constant 0 : i32
    %c0_i32_0 = arith.constant 0 : i32
    %c0_i32_1 = arith.constant 0 : i32
    return %c0_i32, %c0_i32_0 : i32, i32
  }
}

</mosaic_0001>

<llo_original>
// kernel: backbone_nfc_id_forward.1
$region0: #{backbone_nfc_id_forward.1}
  #allocation0 [shape = 'u32[]', space=smem, size = 0x4, offset = 0x4, fixed_abs, tag = 'smem constant byte address 0x4 - core index']
  #allocation1 [shape = 'u32[72,128]{1,0:T(1,128)}', space=vmem, size = 0x9000, scoped, tag = 'internal scratch']
  #allocation2 [shape = 'f32[2,2048]{1,0:T(2,128)}', space=vmem, size = 0x4000, scoped, tag = 'scratch operand']
  %s0 = inlined_call_operand.vmem [shape: bf16[32,512], index: 0, kind: input, shape index: {}]
  %s1 = inlined_call_operand.vmem [shape: bf16[32,2048], index: 1, kind: input, shape index: {}]
  %s2 = inlined_call_operand.vmem [shape: f32[1,2048], index: 2, kind: input, shape index: {}]
  %s3 = inlined_call_operand.vmem [shape: f32[2048,128], index: 3, kind: input, shape index: {}]
  %s4 = inlined_call_operand.vmem [shape: f32[1,128], index: 4, kind: input, shape index: {}]
  %s5 = inlined_call_operand.vmem [shape: f32[2,128], index: 5, kind: output, shape index: {}]
  %s6 = sld [smem:[#allocation0]]
  $region102: #{backbone_nfc_id_forward.1} parent=0
    _
  %s8 = ssub.s32 1, %s6
  %s9 = scalar_select 0, %s8, %s6
  $region1: #{backbone_nfc_id_forward.1} parent=0
    #allocation3 [shape = 'u8[16384]{0}', space=vmem, size = 0x4000, scoped, tag = 'input window, operand 0']
    loop: start=0, step=1, limit=6
    $region2: #{backbone_nfc_id_forward.1} parent=1 // loop_pre_header
      _
    $region3: #{backbone_nfc_id_forward.1} parent=1 // loop_header
      %s11 = sphi 0, %s15
      %p12 = scmp.ge.s32.totalorder %s11, 6
      %s21 = sphi 0, %s23
      %s24 = sphi 0, %s21
      %s25 = sphi 0, %s24
      %s41 = sphi 0, %s25
      %s45 = sphi 0, %s45
      %s47 = sphi 0, %s45
      %s48 = sphi 0, %s47
      %s62 = sphi 0, %s48
      %s66 = sphi 0, %s66
      %s68 = sphi 0, %s66
      %s69 = sphi 0, %s68
      %s83 = sphi 0, %s69
      %s87 = sphi 0, %s87
      %s89 = sphi 0, %s87
      %s90 = sphi 0, %s89
      %s104 = sphi 0, %s90
      %s108 = sphi 0, %s108
      %s110 = sphi 0, %s108
      %s111 = sphi 0, %s110
      %s125 = sphi 0, %s111
      %s129 = sphi 0, %s129
      %s131 = sphi 0, %s129
      %s132 = sphi 0, %s131
      %s146 = sphi 0, %s132
    $region4: #{backbone_nfc_id_forward.1} parent=1 // loop_header_branch
      %14 = sbr.rel (%p12) target = $region8
    $region5: #{backbone_nfc_id_forward.1} parent=1 // loop_body
      %s16 = ssub.s32 %s11, 1
      %s17 = ssub.s32 %s11, 2
      %s18 = sadd.s32 %s11, 1
      %s19 = ssub.s32 %s11, %s18
      %p20 = scmp.eq.s32.totalorder %s19, 0
      %s22 = sadd.s32 %s21, 1
      %s23 = scalar_select %p20, %s21, %s22
      %p26 = pneg %p20
      %p27 = scmp.eq.s32.totalorder %s11, 3
      %p28 = por %p26, %p27
      %p29 = scmp.ne.s32.totalorder %s21, %s24
      %p30 = scmp.eq.s32.totalorder %s11, 0
      %p31 = por %p29, %p30
      %p32 = scmp.ne.s32.totalorder %s21, %s24
      %p33 = scmp.eq.s32.totalorder %s16, 3
      %p34 = por %p32, %p33
      %p35 = scmp.ne.s32.totalorder %s24, %s25
      %p36 = scmp.eq.s32.totalorder %s16, 0
      %p37 = por %p35, %p36
      %p38 = scmp.ne.s32.totalorder %s24, %s25
      %p39 = scmp.eq.s32.totalorder %s17, 3
      %p40 = por %p38, %p39
      %p42 = scmp.ne.s32.totalorder %s25, %s41
      %p43 = scmp.eq.s32.totalorder %s17, 0
      %p44 = por %p42, %p43
      %s46 = sadd.s32 %s45, 1
      %p49 = scmp.eq.s32.totalorder %s11, 3
      %p50 = scmp.ne.s32.totalorder %s45, %s47
      %p51 = scmp.eq.s32.totalorder %s11, 0
      %p52 = por %p50, %p51
      %p53 = scmp.ne.s32.totalorder %s45, %s47
      %p54 = scmp.eq.s32.totalorder %s16, 3
      %p55 = por %p53, %p54
      %p56 = scmp.ne.s32.totalorder %s47, %s48
      %p57 = scmp.eq.s32.totalorder %s16, 0
      %p58 = por %p56, %p57
      %p59 = scmp.ne.s32.totalorder %s47, %s48
      %p60 = scmp.eq.s32.totalorder %s17, 3
      %p61 = por %p59, %p60
      %p63 = scmp.ne.s32.totalorder %s48, %s62
      %p64 = scmp.eq.s32.totalorder %s17, 0
      %p65 = por %p63, %p64
      %s67 = sadd.s32 %s66, 1
      %p70 = scmp.eq.s32.totalorder %s11, 3
      %p71 = scmp.ne.s32.totalorder %s66, %s68
      %p72 = scmp.eq.s32.totalorder %s11, 0
      %p73 = por %p71, %p72
      %p74 = scmp.ne.s32.totalorder %s66, %s68
      %p75 = scmp.eq.s32.totalorder %s16, 3
      %p76 = por %p74, %p75
      %p77 = scmp.ne.s32.totalorder %s68, %s69
      %p78 = scmp.eq.s32.totalorder %s16, 0
      %p79 = por %p77, %p78
      %p80 = scmp.ne.s32.totalorder %s68, %s69
      %p81 = scmp.eq.s32.totalorder %s17, 3
      %p82 = por %p80, %p81
      %p84 = scmp.ne.s32.totalorder %s69, %s83
      %p85 = scmp.eq.s32.totalorder %s17, 0
      %p86 = por %p84, %p85
      %s88 = sadd.s32 %s87, 1
      %p91 = scmp.eq.s32.totalorder %s11, 3
      %p92 = scmp.ne.s32.totalorder %s87, %s89
      %p93 = scmp.eq.s32.totalorder %s11, 0
      %p94 = por %p92, %p93
      %p95 = scmp.ne.s32.totalorder %s87, %s89
      %p96 = scmp.eq.s32.totalorder %s16, 3
      %p97 = por %p95, %p96
      %p98 = scmp.ne.s32.totalorder %s89, %s90
      %p99 = scmp.eq.s32.totalorder %s16, 0
      %p100 = por %p98, %p99
      %p101 = scmp.ne.s32.totalorder %s89, %s90
      %p102 = scmp.eq.s32.totalorder %s17, 3
      %p103 = por %p101, %p102
      %p105 = scmp.ne.s32.totalorder %s90, %s104
      %p106 = scmp.eq.s32.totalorder %s17, 0
      %p107 = por %p105, %p106
      %s109 = sadd.s32 %s108, 1
      %p112 = scmp.eq.s32.totalorder %s11, 3
      %p113 = scmp.ne.s32.totalorder %s108, %s110
      %p114 = scmp.eq.s32.totalorder %s11, 0
      %p115 = por %p113, %p114
      %p116 = scmp.ne.s32.totalorder %s108, %s110
      %p117 = scmp.eq.s32.totalorder %s16, 3
      %p118 = por %p116, %p117
      %p119 = scmp.ne.s32.totalorder %s110, %s111
      %p120 = scmp.eq.s32.totalorder %s16, 0
      %p121 = por %p119, %p120
      %p122 = scmp.ne.s32.totalorder %s110, %s111
      %p123 = scmp.eq.s32.totalorder %s17, 3
      %p124 = por %p122, %p123
      %p126 = scmp.ne.s32.totalorder %s111, %s125
      %p127 = scmp.eq.s32.totalorder %s17, 0
      %p128 = por %p126, %p127
      %s130 = sadd.s32 %s129, 1
      %p133 = scmp.eq.s32.totalorder %s11, 3
      %p134 = scmp.ne.s32.totalorder %s129, %s131
      %p135 = scmp.eq.s32.totalorder %s11, 0
      %p136 = por %p134, %p135
      %p137 = scmp.ne.s32.totalorder %s129, %s131
      %p138 = scmp.eq.s32.totalorder %s16, 3
      %p139 = por %p137, %p138
      %p140 = scmp.ne.s32.totalorder %s131, %s132
      %p141 = scmp.eq.s32.totalorder %s16, 0
      %p142 = por %p140, %p141
      %p143 = scmp.ne.s32.totalorder %s131, %s132
      %p144 = scmp.eq.s32.totalorder %s17, 3
      %p145 = por %p143, %p144
      %p147 = scmp.ne.s32.totalorder %s132, %s146
      %p148 = scmp.eq.s32.totalorder %s17, 0
      %p149 = por %p147, %p148
      %p150 = scmp.le.s32.totalorder 1, %s11
      %p151 = scmp.lt.s32.totalorder %s11, 5
      %p152 = pnand %p150, %p151
      %p153 = pneg %p152
      // Predicated region
      $region9: #{backbone_nfc_id_forward.1} parent=5 // pred_check
        _
      $region10: #{backbone_nfc_id_forward.1} parent=5 // pred_check_branch
        %155 = sbr.rel (%p152) target = $region12
      $region11: #{backbone_nfc_id_forward.1} parent=5 // pred_region
        %s156 = ssub.s32 %s11, 1
        // Predicated region
        $region13: #{backbone_nfc_id_forward.1} parent=11 // pred_check
          %p157 = pneg %p58
        $region14: #{backbone_nfc_id_forward.1} parent=11 // pred_check_branch
          %159 = sbr.rel (%p157) target = $region16
        $region15: #{backbone_nfc_id_forward.1} parent=11 // pred_region
          _
        $region16: #{backbone_nfc_id_forward.1} parent=11 // pred_fallthru
          _
        // Predicated region
        $region17: #{backbone_nfc_id_forward.1} parent=11 // pred_check
          %p160 = pneg %p79
        $region18: #{backbone_nfc_id_forward.1} parent=11 // pred_check_branch
          %162 = sbr.rel (%p160) target = $region20
        $region19: #{backbone_nfc_id_forward.1} parent=11 // pred_region
          _
        $region20: #{backbone_nfc_id_forward.1} parent=11 // pred_fallthru
          _
        // Predicated region
        $region21: #{backbone_nfc_id_forward.1} parent=11 // pred_check
          %p163 = pneg %p100
        $region22: #{backbone_nfc_id_forward.1} parent=11 // pred_check_branch
          %165 = sbr.rel (%p163) target = $region24
        $region23: #{backbone_nfc_id_forward.1} parent=11 // pred_region
          _
        $region24: #{backbone_nfc_id_forward.1} parent=11 // pred_fallthru
          _
        // Predicated region
        $region25: #{backbone_nfc_id_forward.1} parent=11 // pred_check
          %p166 = pneg %p121
        $region26: #{backbone_nfc_id_forward.1} parent=11 // pred_check_branch
          %168 = sbr.rel (%p166) target = $region28
        $region27: #{backbone_nfc_id_forward.1} parent=11 // pred_region
          _
        $region28: #{backbone_nfc_id_forward.1} parent=11 // pred_fallthru
          _
      $region12: #{backbone_nfc_id_forward.1} parent=5 // pred_fallthru
        _
      %p169 = scmp.lt.s32.totalorder %s11, 4
      // Predicated region
      $region29: #{backbone_nfc_id_forward.1} parent=5 // pred_check
        %p170 = pneg %p169
      $region30: #{backbone_nfc_id_forward.1} parent=5 // pred_check_branch
        %172 = sbr.rel (%p170) target = $region32
      $region31: #{backbone_nfc_id_forward.1} parent=5 // pred_region
        // Predicated region
        $region33: #{backbone_nfc_id_forward.1} parent=31 // pred_check
          %p173 = pneg %p31
        $region34: #{backbone_nfc_id_forward.1} parent=31 // pred_check_branch
          %175 = sbr.rel (%p173) target = $region36
        $region35: #{backbone_nfc_id_forward.1} parent=31 // pred_region
          %s176 = sand.u32 %s21, 1
          %s177 = sand.u32 %s21, 1
          %s178 = smul.addr %s177, 16
          %s179 = scalar_lea.vmem [#allocation3], %s178
          %s180 = smul.addr %s11, 4
          %s181 = scalar_lea.vmem %s0, %s180
          // Predicated region
          $region37: #{backbone_nfc_id_forward.1} parent=35 // pred_check
            _
          $region38: #{backbone_nfc_id_forward.1} parent=35 // pred_check_branch
            %183 = sbr.rel (0) target = $region40
          $region39: #{backbone_nfc_id_forward.1} parent=35 // pred_region
            // Predicated region
            $region41: #{backbone_nfc_id_forward.1} parent=39 // pred_check
              _
            $region42: #{backbone_nfc_id_forward.1} parent=39 // pred_check_branch
              %185 = sbr.rel target = $region44
            $region43: #{backbone_nfc_id_forward.1} parent=39 // pred_region
              // Predicated region
              $region56: #{backbone_nfc_id_forward.1} parent=43 // pred_check
                _
              $region57: #{backbone_nfc_id_forward.1} parent=43 // pred_check_branch
                %207 = sbr.rel (0) target = $region59
              $region58: #{backbone_nfc_id_forward.1} parent=43 // pred_region
                loop: start=0, step=1, limit=1
                $region60: #{backbone_nfc_id_forward.1} parent=58 // loop_pre_header
                  _
                $region61: #{backbone_nfc_id_forward.1} parent=58 // loop_header
                  %s209 = sphi 0, %s213
                  %p210 = scmp.ge.s32.totalorder %s209, 1
                  %s214 = sphi %s181, %s181
                  %s215 = sphi %s179, %s179
                $region62: #{backbone_nfc_id_forward.1} parent=58 // loop_header_branch
                  %212 = sbr.rel (%p210) target = $region66
                $region63: #{backbone_nfc_id_forward.1} parent=58 // loop_body
                  _
                $region64: #{backbone_nfc_id_forward.1} parent=58 // loop_footer
                  %s213 = sadd.s32 1, %s209
                $region65: #{backbone_nfc_id_forward.1} parent=58 // loop_footer_branch
                  %208 = sbr.rel target = $region61
                $region66: #{backbone_nfc_id_forward.1} parent=58 // loop_exit
                  _
                %s217 = ssub.s32 16, 1
                loop: start=0, step=1, limit=1
                $region67: #{backbone_nfc_id_forward.1} parent=58 // loop_pre_header
                  _
                $region68: #{backbone_nfc_id_forward.1} parent=58 // loop_header
                  %s219 = sphi 0, %s223
                  %p220 = scmp.ge.s32.totalorder %s219, 1
                  %s224 = sphi %s181, %s181
                  %s225 = sphi %s179, %s179
                $region69: #{backbone_nfc_id_forward.1} parent=58 // loop_header_branch
                  %222 = sbr.rel (%p220) target = $region73
                $region70: #{backbone_nfc_id_forward.1} parent=58 // loop_body
                  %v226 = vld [vmem:[%s224] sm:%s217]
                  %227 = vst [vmem:[%s225] sm:%s217] %v226
                  %v228 = vld [vmem:[%s224 + $0x10] sm:%s217]
                  %229 = vst [vmem:[%s225 + $0x4] sm:%s217] %v228
                  %v230 = vld [vmem:[%s224 + $0x20] sm:%s217]
                  %231 = vst [vmem:[%s225 + $0x8] sm:%s217] %v230
                  %v232 = vld [vmem:[%s224 + $0x30] sm:%s217]
                  %233 = vst [vmem:[%s225 + $0xc] sm:%s217] %v232
                $region71: #{backbone_nfc_id_forward.1} parent=58 // loop_footer
                  %s223 = sadd.s32 1, %s219
                $region72: #{backbone_nfc_id_forward.1} parent=58 // loop_footer_branch
                  %218 = sbr.rel target = $region68
                $region73: #{backbone_nfc_id_forward.1} parent=58 // loop_exit
                  _
              $region59: #{backbone_nfc_id_forward.1} parent=43 // pred_fallthru
                _
            $region44: #{backbone_nfc_id_forward.1} parent=39 // pred_fallthru
              _
            // Predicated region
            $region45: #{backbone_nfc_id_forward.1} parent=39 // pred_check
              _
            $region46: #{backbone_nfc_id_forward.1} parent=39 // pred_check_branch
              %187 = sbr.rel (0) target = $region48
            $region47: #{backbone_nfc_id_forward.1} parent=39 // pred_region
              %s189 = ssub.s32 16, 1
              loop: start=0, step=1, limit=1
              $region49: #{backbone_nfc_id_forward.1} parent=47 // loop_pre_header
                _
              $region50: #{backbone_nfc_id_forward.1} parent=47 // loop_header
                %s191 = sphi 0, %s195
                %p192 = scmp.ge.s32.totalorder %s191, 1
                %s196 = sphi %s181, %s181
                %s197 = sphi %s179, %s179
              $region51: #{backbone_nfc_id_forward.1} parent=47 // loop_header_branch
                %194 = sbr.rel (%p192) target = $region55
              $region52: #{backbone_nfc_id_forward.1} parent=47 // loop_body
                %v198 = vld [vmem:[%s196] sm:%s189]
                %199 = vst [vmem:[%s197] sm:%s189] %v198
                %v200 = vld [vmem:[%s196 + $0x10] sm:%s189]
                %201 = vst [vmem:[%s197 + $0x4] sm:%s189] %v200
                %v202 = vld [vmem:[%s196 + $0x20] sm:%s189]
                %203 = vst [vmem:[%s197 + $0x8] sm:%s189] %v202
                %v204 = vld [vmem:[%s196 + $0x30] sm:%s189]
                %205 = vst [vmem:[%s197 + $0xc] sm:%s189] %v204
              $region53: #{backbone_nfc_id_forward.1} parent=47 // loop_footer
                %s195 = sadd.s32 1, %s191
              $region54: #{backbone_nfc_id_forward.1} parent=47 // loop_footer_branch
                %190 = sbr.rel target = $region50
              $region55: #{backbone_nfc_id_forward.1} parent=47 // loop_exit
                _
            $region48: #{backbone_nfc_id_forward.1} parent=39 // pred_fallthru
              _
          $region40: #{backbone_nfc_id_forward.1} parent=35 // pred_fallthru
            _
          %234 = vnop
        $region36: #{backbone_nfc_id_forward.1} parent=31 // pred_fallthru
          _
      $region32: #{backbone_nfc_id_forward.1} parent=5 // pred_fallthru
        _
      %p235 = scmp.le.s32.totalorder 1, %s11
      %p236 = scmp.lt.s32.totalorder %s11, 5
      %p237 = pnand %p235, %p236
      %p238 = pneg %p237
      // Predicated region
      $region74: #{backbone_nfc_id_forward.1} parent=5 // pred_check
        _
      $region75: #{backbone_nfc_id_forward.1} parent=5 // pred_check_branch
        %240 = sbr.rel (%p237) target = $region77
      $region76: #{backbone_nfc_id_forward.1} parent=5 // pred_region
        %s241 = ssub.s32 %s11, 1
        %s242 = sand.u32 %s24, 1
        %s243 = sand.u32 %s24, 1
        %s244 = smul.addr %s243, 16
        %s245 = scalar_lea.vmem [#allocation3], %s244
        // Predicated region
        $region78: #{backbone_nfc_id_forward.1} parent=76 // pred_check
          %p246 = pneg %p37
        $region79: #{backbone_nfc_id_forward.1} parent=76 // pred_check_branch
          %248 = sbr.rel (%p246) target = $region81
        $region80: #{backbone_nfc_id_forward.1} parent=76 // pred_region
          _
        $region81: #{backbone_nfc_id_forward.1} parent=76 // pred_fallthru
          _
        %s249 = sand.u32 %s24, 1
        %s250 = sand.u32 %s24, 1
        %s251 = smul.addr %s250, 16
        %s252 = scalar_lea.vmem [#allocation3], %s251
        %p253 = pneg %p37
        %p254 = pneg %p34
        %p255 = pneg %p58
        %p256 = pneg %p55
        %p257 = pneg %p79
        %p258 = pneg %p76
        %p259 = pneg %p100
        %p260 = pneg %p97
        %p261 = pneg %p121
        %p262 = pneg %p118
        %p263 = pneg %p142
        %p264 = pneg %p139
        %p266 = scmp.eq.s32.totalorder %s16, 0
        // Predicated region
        $region82: #{backbone_nfc_id_forward.1} parent=76 // pred_check
          %p267 = pneg %p266
        $region83: #{backbone_nfc_id_forward.1} parent=76 // pred_check_branch
          %269 = sbr.rel (%p267) target = $region85
        $region84: #{backbone_nfc_id_forward.1} parent=76 // pred_region
          %270 = vst [vmem:[#allocation2] sm:$0xff] 0.0
          %271 = vst [vmem:[#allocation2 + $0x8] sm:$0xff] 0.0
          %272 = vst [vmem:[#allocation2 + $0x10] sm:$0xff] 0.0
          %273 = vst [vmem:[#allocation2 + $0x18] sm:$0xff] 0.0
        $region85: #{backbone_nfc_id_forward.1} parent=76 // pred_fallthru
          _
        %v274 = vld [vmem:[%s245] sm:$0xf]
        %v275 = vld [vmem:[%s245 + $0x4] sm:$0xf]
        %v276 = vld [vmem:[%s245 + $0x8] sm:$0xf]
        %v277 = vld [vmem:[%s245 + $0xc] sm:$0xf]
        %v278 = vld [vmem:[%s1] sm:$0xff]
        %v279 = vld [vmem:[%s1 + $0x8] sm:$0xff]
        %v280 = vld [vmem:[%s1 + $0x10] sm:$0xff]
        %v281 = vld [vmem:[%s1 + $0x18] sm:$0xff]
        %v282 = vld [vmem:[%s1 + $0x20] sm:$0xff]
        %v283 = vld [vmem:[%s1 + $0x28] sm:$0xff]
        %v284 = vld [vmem:[%s1 + $0x30] sm:$0xff]
        %v285 = vld [vmem:[%s1 + $0x38] sm:$0xff]
        %v286 = vld [vmem:[%s1 + $0x40] sm:$0xff]
        %v287 = vld [vmem:[%s1 + $0x48] sm:$0xff]
        %v288 = vld [vmem:[%s1 + $0x50] sm:$0xff]
        %v289 = vld [vmem:[%s1 + $0x58] sm:$0xff]
        %v290 = vld [vmem:[%s1 + $0x60] sm:$0xff]
        %v291 = vld [vmem:[%s1 + $0x68] sm:$0xff]
        %v292 = vld [vmem:[%s1 + $0x70] sm:$0xff]
        %v293 = vld [vmem:[%s1 + $0x78] sm:$0xff]
        %v294 = vld [vmem:[%s1 + $0x80] sm:$0xff]
        %v295 = vld [vmem:[%s1 + $0x88] sm:$0xff]
        %v296 = vld [vmem:[%s1 + $0x90] sm:$0xff]
        %v297 = vld [vmem:[%s1 + $0x98] sm:$0xff]
        %v298 = vld [vmem:[%s1 + $0xa0] sm:$0xff]
        %v299 = vld [vmem:[%s1 + $0xa8] sm:$0xff]
        %v300 = vld [vmem:[%s1 + $0xb0] sm:$0xff]
        %v301 = vld [vmem:[%s1 + $0xb8] sm:$0xff]
        %v302 = vld [vmem:[%s1 + $0xc0] sm:$0xff]
        %v303 = vld [vmem:[%s1 + $0xc8] sm:$0xff]
        %v304 = vld [vmem:[%s1 + $0xd0] sm:$0xff]
        %v305 = vld [vmem:[%s1 + $0xd8] sm:$0xff]
        %v306 = vld [vmem:[%s1 + $0xe0] sm:$0xff]
        %v307 = vld [vmem:[%s1 + $0xe8] sm:$0xff]
        %v308 = vld [vmem:[%s1 + $0xf0] sm:$0xff]
        %v309 = vld [vmem:[%s1 + $0xf8] sm:$0xff]
        %v310 = vld [vmem:[%s2] sm:$0xff]
        %v311 = vld [vmem:[%s2 + $0x8] sm:$0xff]
        %v314 = vperm.slane %v310, 0
        %v315 = vperm.slane %v310, 1
        %v316 = vperm.slane %v310, 2
        %v317 = vperm.slane %v310, 3
        %v318 = vperm.slane %v310, 4
        %v319 = vperm.slane %v310, 5
        %v320 = vperm.slane %v310, 6
        %v321 = vperm.slane %v310, 7
        %v322 = vperm.slane %v311, 0
        %v323 = vperm.slane %v311, 1
        %v324 = vperm.slane %v311, 2
        %v325 = vperm.slane %v311, 3
        %v326 = vperm.slane %v311, 4
        %v327 = vperm.slane %v311, 5
        %v328 = vperm.slane %v311, 6
        %v329 = vperm.slane %v311, 7
        %v350 = vunpack.c.l.b16 %v274
        %v351 = vunpack.c.l.b16 %v275
        %v352 = vunpack.c.l.b16 %v276
        %v353 = vunpack.c.l.b16 %v277
        %v354 = vpack.c.b16 %v351, %v350
        %v355 = vpack.c.b16 %v353, %v352
        %358 = vxpose.xlu0.c.b16.start [1/8] %v354, 128
        %359 = vxpose.xlu0.c.b16.cont [2/8] %v355, 128
        %360 = vxpose.xlu0.c.b16.cont [3/8] 0, 128
        %361 = vxpose.xlu0.c.b16.cont [4/8] 0, 128
        %362 = vxpose.xlu0.c.b16.cont [5/8] 0, 128
        %363 = vxpose.xlu0.c.b16.cont [6/8] 0, 128
        %364 = vxpose.xlu0.c.b16.cont [7/8] 0, 128
        %365 = vxpose.xlu0.c.b16.end [8/8] 0, 128
        %v366 = vpop.trf.xlu0
        %v367 = vpop.trf.xlu0
        %v368 = vpop.trf.xlu0
        %v369 = vpop.trf.xlu0
        %v370 = vpop.trf.xlu0
        %v371 = vpop.trf.xlu0
        %v372 = vpop.trf.xlu0
        %v373 = vpop.trf.xlu0
        %v406 = vunpack.c.l.b16 %v278
        %v407 = vunpack.c.h.b16 %v278
        %v408 = vunpack.c.l.b16 %v279
        %v409 = vunpack.c.h.b16 %v279
        %v410 = vunpack.c.l.b16 %v280
        %v411 = vunpack.c.h.b16 %v280
        %v412 = vunpack.c.l.b16 %v281
        %v413 = vunpack.c.h.b16 %v281
        %v414 = vunpack.c.l.b16 %v282
        %v415 = vunpack.c.h.b16 %v282
        %v416 = vunpack.c.l.b16 %v283
        %v417 = vunpack.c.h.b16 %v283
        %v418 = vunpack.c.l.b16 %v284
        %v419 = vunpack.c.h.b16 %v284
        %v420 = vunpack.c.l.b16 %v285
        %v421 = vunpack.c.h.b16 %v285
        %v422 = vunpack.c.l.b16 %v286
        %v423 = vunpack.c.h.b16 %v286
        %v424 = vunpack.c.l.b16 %v287
        %v425 = vunpack.c.h.b16 %v287
        %v426 = vunpack.c.l.b16 %v288
        %v427 = vunpack.c.h.b16 %v288
        %v428 = vunpack.c.l.b16 %v289
        %v429 = vunpack.c.h.b16 %v289
        %v430 = vunpack.c.l.b16 %v290
        %v431 = vunpack.c.h.b16 %v290
        %v432 = vunpack.c.l.b16 %v291
        %v433 = vunpack.c.h.b16 %v291
        %v434 = vunpack.c.l.b16 %v292
        %v435 = vunpack.c.h.b16 %v292
        %v436 = vunpack.c.l.b16 %v293
        %v437 = vunpack.c.h.b16 %v293
        %v438 = vunpack.c.l.b16 %v294
        %v439 = vunpack.c.h.b16 %v294
        %v440 = vunpack.c.l.b16 %v295
        %v441 = vunpack.c.h.b16 %v295
        %v442 = vunpack.c.l.b16 %v296
        %v443 = vunpack.c.h.b16 %v296
        %v444 = vunpack.c.l.b16 %v297
        %v445 = vunpack.c.h.b16 %v297
        %v446 = vunpack.c.l.b16 %v298
        %v447 = vunpack.c.h.b16 %v298
        %v448 = vunpack.c.l.b16 %v299
        %v449 = vunpack.c.h.b16 %v299
        %v450 = vunpack.c.l.b16 %v300
        %v451 = vunpack.c.h.b16 %v300
        %v452 = vunpack.c.l.b16 %v301
        %v453 = vunpack.c.h.b16 %v301
        %v454 = vunpack.c.l.b16 %v302
        %v455 = vunpack.c.h.b16 %v302
        %v456 = vunpack.c.l.b16 %v303
        %v457 = vunpack.c.h.b16 %v303
        %v458 = vunpack.c.l.b16 %v304
        %v459 = vunpack.c.h.b16 %v304
        %v460 = vunpack.c.l.b16 %v305
        %v461 = vunpack.c.h.b16 %v305
        %v462 = vunpack.c.l.b16 %v306
        %v463 = vunpack.c.h.b16 %v306
        %v464 = vunpack.c.l.b16 %v307
        %v465 = vunpack.c.h.b16 %v307
        %v466 = vunpack.c.l.b16 %v308
        %v467 = vunpack.c.h.b16 %v308
        %v468 = vunpack.c.l.b16 %v309
        %v469 = vunpack.c.h.b16 %v309
        %v470 = vpack.c.b16 %v422, %v406
        %v471 = vpack.c.b16 %v423, %v407
        %v472 = vpack.c.b16 %v424, %v408
        %v473 = vpack.c.b16 %v425, %v409
        %v474 = vpack.c.b16 %v426, %v410
        %v475 = vpack.c.b16 %v427, %v411
        %v476 = vpack.c.b16 %v428, %v412
        %v477 = vpack.c.b16 %v429, %v413
        %v478 = vpack.c.b16 %v430, %v414
        %v479 = vpack.c.b16 %v431, %v415
        %v480 = vpack.c.b16 %v432, %v416
        %v481 = vpack.c.b16 %v433, %v417
        %v482 = vpack.c.b16 %v434, %v418
        %v483 = vpack.c.b16 %v435, %v419
        %v484 = vpack.c.b16 %v436, %v420
        %v485 = vpack.c.b16 %v437, %v421
        %v486 = vpack.c.b16 %v454, %v438
        %v487 = vpack.c.b16 %v455, %v439
        %v488 = vpack.c.b16 %v456, %v440
        %v489 = vpack.c.b16 %v457, %v441
        %v490 = vpack.c.b16 %v458, %v442
        %v491 = vpack.c.b16 %v459, %v443
        %v492 = vpack.c.b16 %v460, %v444
        %v493 = vpack.c.b16 %v461, %v445
        %v494 = vpack.c.b16 %v462, %v446
        %v495 = vpack.c.b16 %v463, %v447
        %v496 = vpack.c.b16 %v464, %v448
        %v497 = vpack.c.b16 %v465, %v449
        %v498 = vpack.c.b16 %v466, %v450
        %v499 = vpack.c.b16 %v467, %v451
        %v500 = vpack.c.b16 %v468, %v452
        %v501 = vpack.c.b16 %v469, %v453
        %vm534 = vcmask 261120
        %v536 = vsel %vm534, %v366, 0
        %v539 = vsel %vm534, %v367, 0
        %v542 = vsel %vm534, %v368, 0
        %v545 = vsel %vm534, %v369, 0
        %v548 = vsel %vm534, %v370, 0
        %v551 = vsel %vm534, %v371, 0
        %v554 = vsel %vm534, %v372, 0
        %v557 = vsel %vm534, %v373, 0
        %559 = vmatpush.bf16.msra.mxu0 0
        %560 = vmatpush.bf16.msra.mxu0 0
        %561 = vmatpush.bf16.msra.mxu0 0
        %562 = vmatpush.bf16.msra.mxu0 0
        %563 = vmatpush.bf16.msra.mxu0 0
        %564 = vmatpush.bf16.msra.mxu0 0
        %565 = vmatpush.bf16.msra.mxu0 %v486
        %566 = vmatpush.bf16.msra.mxu0 %v470
        %567 = vmatmul.bf16.gmra.mxu0 %v536
        %v568 = vpop.f32.mrf.mxu0
        %v569 = vadd.f32 %v314, %v568
        %v570 = vpop.f32.mrf.mxu0
        %v571 = vadd.f32 %v314, %v570
        %572 = vmatmul.bf16.gmra.mxu0 %v539
        %v573 = vpop.f32.mrf.mxu0
        %v574 = vadd.f32 %v314, %v573
        %v575 = vpop.f32.mrf.mxu0
        %v576 = vadd.f32 %v314, %v575
        %577 = vmatmul.bf16.gmra.mxu0 %v542
        %v578 = vpop.f32.mrf.mxu0
        %v579 = vadd.f32 %v314, %v578
        %v580 = vpop.f32.mrf.mxu0
        %v581 = vadd.f32 %v314, %v580
        %582 = vmatmul.bf16.gmra.mxu0 %v545
        %v583 = vpop.f32.mrf.mxu0
        %v584 = vadd.f32 %v314, %v583
        %v585 = vpop.f32.mrf.mxu0
        %v586 = vadd.f32 %v314, %v585
        %587 = vmatmul.bf16.gmra.mxu0 %v548
        %v588 = vpop.f32.mrf.mxu0
        %v589 = vadd.f32 %v314, %v588
        %v590 = vpop.f32.mrf.mxu0
        %v591 = vadd.f32 %v314, %v590
        %592 = vmatmul.bf16.gmra.mxu0 %v551
        %v593 = vpop.f32.mrf.mxu0
        %v594 = vadd.f32 %v314, %v593
        %v595 = vpop.f32.mrf.mxu0
        %v596 = vadd.f32 %v314, %v595
        %597 = vmatmul.bf16.gmra.mxu0 %v554
        %v598 = vpop.f32.mrf.mxu0
        %v599 = vadd.f32 %v314, %v598
        %v600 = vpop.f32.mrf.mxu0
        %v601 = vadd.f32 %v314, %v600
        %602 = vmatmul.bf16.gmra.mxu0 %v557
        %v603 = vpop.f32.mrf.mxu0
        %v604 = vadd.f32 %v314, %v603
        %v605 = vpop.f32.mrf.mxu0
        %v606 = vadd.f32 %v314, %v605
        %607 = vdwg.mxu0
        %608 = vmatpush.bf16.msra.mxu0 0
        %609 = vmatpush.bf16.msra.mxu0 0
        %610 = vmatpush.bf16.msra.mxu0 0
        %611 = vmatpush.bf16.msra.mxu0 0
        %612 = vmatpush.bf16.msra.mxu0 0
        %613 = vmatpush.bf16.msra.mxu0 0
        %614 = vmatpush.bf16.msra.mxu0 %v487
        %615 = vmatpush.bf16.msra.mxu0 %v471
        %616 = vmatmul.bf16.gmra.mxu0 %v536
        %v617 = vpop.f32.mrf.mxu0
        %v618 = vadd.f32 %v315, %v617
        %v619 = vpop.f32.mrf.mxu0
        %v620 = vadd.f32 %v315, %v619
        %621 = vmatmul.bf16.gmra.mxu0 %v539
        %v622 = vpop.f32.mrf.mxu0
        %v623 = vadd.f32 %v315, %v622
        %v624 = vpop.f32.mrf.mxu0
        %v625 = vadd.f32 %v315, %v624
        %626 = vmatmul.bf16.gmra.mxu0 %v542
        %v627 = vpop.f32.mrf.mxu0
        %v628 = vadd.f32 %v315, %v627
        %v629 = vpop.f32.mrf.mxu0
        %v630 = vadd.f32 %v315, %v629
        %631 = vmatmul.bf16.gmra.mxu0 %v545
        %v632 = vpop.f32.mrf.mxu0
        %v633 = vadd.f32 %v315, %v632
        %v634 = vpop.f32.mrf.mxu0
        %v635 = vadd.f32 %v315, %v634
        %636 = vmatmul.bf16.gmra.mxu0 %v548
        %v637 = vpop.f32.mrf.mxu0
        %v638 = vadd.f32 %v315, %v637
        %v639 = vpop.f32.mrf.mxu0
        %v640 = vadd.f32 %v315, %v639
        %641 = vmatmul.bf16.gmra.mxu0 %v551
        %v642 = vpop.f32.mrf.mxu0
        %v643 = vadd.f32 %v315, %v642
        %v644 = vpop.f32.mrf.mxu0
        %v645 = vadd.f32 %v315, %v644
        %646 = vmatmul.bf16.gmra.mxu0 %v554
        %v647 = vpop.f32.mrf.mxu0
        %v648 = vadd.f32 %v315, %v647
        %v649 = vpop.f32.mrf.mxu0
        %v650 = vadd.f32 %v315, %v649
        %651 = vmatmul.bf16.gmra.mxu0 %v557
        %v652 = vpop.f32.mrf.mxu0
        %v653 = vadd.f32 %v315, %v652
        %v654 = vpop.f32.mrf.mxu0
        %v655 = vadd.f32 %v315, %v654
        %656 = vdwg.mxu0
        %657 = vmatpush.bf16.msra.mxu0 0
        %658 = vmatpush.bf16.msra.mxu0 0
        %659 = vmatpush.bf16.msra.mxu0 0
        %660 = vmatpush.bf16.msra.mxu0 0
        %661 = vmatpush.bf16.msra.mxu0 0
        %662 = vmatpush.bf16.msra.mxu0 0
        %663 = vmatpush.bf16.msra.mxu0 %v488
        %664 = vmatpush.bf16.msra.mxu0 %v472
        %665 = vmatmul.bf16.gmra.mxu0 %v536
        %v666 = vpop.f32.mrf.mxu0
        %v667 = vadd.f32 %v316, %v666
        %v668 = vpop.f32.mrf.mxu0
        %v669 = vadd.f32 %v316, %v668
        %670 = vmatmul.bf16.gmra.mxu0 %v539
        %v671 = vpop.f32.mrf.mxu0
        %v672 = vadd.f32 %v316, %v671
        %v673 = vpop.f32.mrf.mxu0
        %v674 = vadd.f32 %v316, %v673
        %675 = vmatmul.bf16.gmra.mxu0 %v542
        %v676 = vpop.f32.mrf.mxu0
        %v677 = vadd.f32 %v316, %v676
        %v678 = vpop.f32.mrf.mxu0
        %v679 = vadd.f32 %v316, %v678
        %680 = vmatmul.bf16.gmra.mxu0 %v545
        %v681 = vpop.f32.mrf.mxu0
        %v682 = vadd.f32 %v316, %v681
        %v683 = vpop.f32.mrf.mxu0
        %v684 = vadd.f32 %v316, %v683
        %685 = vmatmul.bf16.gmra.mxu0 %v548
        %v686 = vpop.f32.mrf.mxu0
        %v687 = vadd.f32 %v316, %v686
        %v688 = vpop.f32.mrf.mxu0
        %v689 = vadd.f32 %v316, %v688
        %690 = vmatmul.bf16.gmra.mxu0 %v551
        %v691 = vpop.f32.mrf.mxu0
        %v692 = vadd.f32 %v316, %v691
        %v693 = vpop.f32.mrf.mxu0
        %v694 = vadd.f32 %v316, %v693
        %695 = vmatmul.bf16.gmra.mxu0 %v554
        %v696 = vpop.f32.mrf.mxu0
        %v697 = vadd.f32 %v316, %v696
        %v698 = vpop.f32.mrf.mxu0
        %v699 = vadd.f32 %v316, %v698
        %700 = vmatmul.bf16.gmra.mxu0 %v557
        %v701 = vpop.f32.mrf.mxu0
        %v702 = vadd.f32 %v316, %v701
        %v703 = vpop.f32.mrf.mxu0
        %v704 = vadd.f32 %v316, %v703
        %705 = vdwg.mxu0
        %706 = vmatpush.bf16.msra.mxu0 0
        %707 = vmatpush.bf16.msra.mxu0 0
        %708 = vmatpush.bf16.msra.mxu0 0
        %709 = vmatpush.bf16.msra.mxu0 0
        %710 = vmatpush.bf16.msra.mxu0 0
        %711 = vmatpush.bf16.msra.mxu0 0
        %712 = vmatpush.bf16.msra.mxu0 %v489
        %713 = vmatpush.bf16.msra.mxu0 %v473
        %714 = vmatmul.bf16.gmra.mxu0 %v536
        %v715 = vpop.f32.mrf.mxu0
        %v716 = vadd.f32 %v317, %v715
        %v717 = vpop.f32.mrf.mxu0
        %v718 = vadd.f32 %v317, %v717
        %719 = vmatmul.bf16.gmra.mxu0 %v539
        %v720 = vpop.f32.mrf.mxu0
        %v721 = vadd.f32 %v317, %v720
        %v722 = vpop.f32.mrf.mxu0
        %v723 = vadd.f32 %v317, %v722
        %724 = vmatmul.bf16.gmra.mxu0 %v542
        %v725 = vpop.f32.mrf.mxu0
        %v726 = vadd.f32 %v317, %v725
        %v727 = vpop.f32.mrf.mxu0
        %v728 = vadd.f32 %v317, %v727
        %729 = vmatmul.bf16.gmra.mxu0 %v545
        %v730 = vpop.f32.mrf.mxu0
        %v731 = vadd.f32 %v317, %v730
        %v732 = vpop.f32.mrf.mxu0
        %v733 = vadd.f32 %v317, %v732
        %734 = vmatmul.bf16.gmra.mxu0 %v548
        %v735 = vpop.f32.mrf.mxu0
        %v736 = vadd.f32 %v317, %v735
        %v737 = vpop.f32.mrf.mxu0
        %v738 = vadd.f32 %v317, %v737
        %739 = vmatmul.bf16.gmra.mxu0 %v551
        %v740 = vpop.f32.mrf.mxu0
        %v741 = vadd.f32 %v317, %v740
        %v742 = vpop.f32.mrf.mxu0
        %v743 = vadd.f32 %v317, %v742
        %744 = vmatmul.bf16.gmra.mxu0 %v554
        %v745 = vpop.f32.mrf.mxu0
        %v746 = vadd.f32 %v317, %v745
        %v747 = vpop.f32.mrf.mxu0
        %v748 = vadd.f32 %v317, %v747
        %749 = vmatmul.bf16.gmra.mxu0 %v557
        %v750 = vpop.f32.mrf.mxu0
        %v751 = vadd.f32 %v317, %v750
        %v752 = vpop.f32.mrf.mxu0
        %v753 = vadd.f32 %v317, %v752
        %754 = vdwg.mxu0
        %755 = vmatpush.bf16.msra.mxu0 0
        %756 = vmatpush.bf16.msra.mxu0 0
        %757 = vmatpush.bf16.msra.mxu0 0
        %758 = vmatpush.bf16.msra.mxu0 0
        %759 = vmatpush.bf16.msra.mxu0 0
        %760 = vmatpush.bf16.msra.mxu0 0
        %761 = vmatpush.bf16.msra.mxu0 %v490
        %762 = vmatpush.bf16.msra.mxu0 %v474
        %763 = vmatmul.bf16.gmra.mxu0 %v536
        %v764 = vpop.f32.mrf.mxu0
        %v765 = vadd.f32 %v318, %v764
        %v766 = vpop.f32.mrf.mxu0
        %v767 = vadd.f32 %v318, %v766
        %768 = vmatmul.bf16.gmra.mxu0 %v539
        %v769 = vpop.f32.mrf.mxu0
        %v770 = vadd.f32 %v318, %v769
        %v771 = vpop.f32.mrf.mxu0
        %v772 = vadd.f32 %v318, %v771
        %773 = vmatmul.bf16.gmra.mxu0 %v542
        %v774 = vpop.f32.mrf.mxu0
        %v775 = vadd.f32 %v318, %v774
        %v776 = vpop.f32.mrf.mxu0
        %v777 = vadd.f32 %v318, %v776
        %778 = vmatmul.bf16.gmra.mxu0 %v545
        %v779 = vpop.f32.mrf.mxu0
        %v780 = vadd.f32 %v318, %v779
        %v781 = vpop.f32.mrf.mxu0
        %v782 = vadd.f32 %v318, %v781
        %783 = vmatmul.bf16.gmra.mxu0 %v548
        %v784 = vpop.f32.mrf.mxu0
        %v785 = vadd.f32 %v318, %v784
        %v786 = vpop.f32.mrf.mxu0
        %v787 = vadd.f32 %v318, %v786
        %788 = vmatmul.bf16.gmra.mxu0 %v551
        %v789 = vpop.f32.mrf.mxu0
        %v790 = vadd.f32 %v318, %v789
        %v791 = vpop.f32.mrf.mxu0
        %v792 = vadd.f32 %v318, %v791
        %793 = vmatmul.bf16.gmra.mxu0 %v554
        %v794 = vpop.f32.mrf.mxu0
        %v795 = vadd.f32 %v318, %v794
        %v796 = vpop.f32.mrf.mxu0
        %v797 = vadd.f32 %v318, %v796
        %798 = vmatmul.bf16.gmra.mxu0 %v557
        %v799 = vpop.f32.mrf.mxu0
        %v800 = vadd.f32 %v318, %v799
        %v801 = vpop.f32.mrf.mxu0
        %v802 = vadd.f32 %v318, %v801
        %803 = vdwg.mxu0
        %804 = vmatpush.bf16.msra.mxu0 0
        %805 = vmatpush.bf16.msra.mxu0 0
        %806 = vmatpush.bf16.msra.mxu0 0
        %807 = vmatpush.bf16.msra.mxu0 0
        %808 = vmatpush.bf16.msra.mxu0 0
        %809 = vmatpush.bf16.msra.mxu0 0
        %810 = vmatpush.bf16.msra.mxu0 %v491
        %811 = vmatpush.bf16.msra.mxu0 %v475
        %812 = vmatmul.bf16.gmra.mxu0 %v536
        %v813 = vpop.f32.mrf.mxu0
        %v814 = vadd.f32 %v319, %v813
        %v815 = vpop.f32.mrf.mxu0
        %v816 = vadd.f32 %v319, %v815
        %817 = vmatmul.bf16.gmra.mxu0 %v539
        %v818 = vpop.f32.mrf.mxu0
        %v819 = vadd.f32 %v319, %v818
        %v820 = vpop.f32.mrf.mxu0
        %v821 = vadd.f32 %v319, %v820
        %822 = vmatmul.bf16.gmra.mxu0 %v542
        %v823 = vpop.f32.mrf.mxu0
        %v824 = vadd.f32 %v319, %v823
        %v825 = vpop.f32.mrf.mxu0
        %v826 = vadd.f32 %v319, %v825
        %827 = vmatmul.bf16.gmra.mxu0 %v545
        %v828 = vpop.f32.mrf.mxu0
        %v829 = vadd.f32 %v319, %v828
        %v830 = vpop.f32.mrf.mxu0
        %v831 = vadd.f32 %v319, %v830
        %832 = vmatmul.bf16.gmra.mxu0 %v548
        %v833 = vpop.f32.mrf.mxu0
        %v834 = vadd.f32 %v319, %v833
        %v835 = vpop.f32.mrf.mxu0
        %v836 = vadd.f32 %v319, %v835
        %837 = vmatmul.bf16.gmra.mxu0 %v551
        %v838 = vpop.f32.mrf.mxu0
        %v839 = vadd.f32 %v319, %v838
        %v840 = vpop.f32.mrf.mxu0
        %v841 = vadd.f32 %v319, %v840
        %842 = vmatmul.bf16.gmra.mxu0 %v554
        %v843 = vpop.f32.mrf.mxu0
        %v844 = vadd.f32 %v319, %v843
        %v845 = vpop.f32.mrf.mxu0
        %v846 = vadd.f32 %v319, %v845
        %847 = vmatmul.bf16.gmra.mxu0 %v557
        %v848 = vpop.f32.mrf.mxu0
        %v849 = vadd.f32 %v319, %v848
        %v850 = vpop.f32.mrf.mxu0
        %v851 = vadd.f32 %v319, %v850
        %852 = vdwg.mxu0
        %853 = vmatpush.bf16.msra.mxu0 0
        %854 = vmatpush.bf16.msra.mxu0 0
        %855 = vmatpush.bf16.msra.mxu0 0
        %856 = vmatpush.bf16.msra.mxu0 0
        %857 = vmatpush.bf16.msra.mxu0 0
        %858 = vmatpush.bf16.msra.mxu0 0
        %859 = vmatpush.bf16.msra.mxu0 %v492
        %860 = vmatpush.bf16.msra.mxu0 %v476
        %861 = vmatmul.bf16.gmra.mxu0 %v536
        %v862 = vpop.f32.mrf.mxu0
        %v863 = vadd.f32 %v320, %v862
        %v864 = vpop.f32.mrf.mxu0
        %v865 = vadd.f32 %v320, %v864
        %866 = vmatmul.bf16.gmra.mxu0 %v539
        %v867 = vpop.f32.mrf.mxu0
        %v868 = vadd.f32 %v320, %v867
        %v869 = vpop.f32.mrf.mxu0
        %v870 = vadd.f32 %v320, %v869
        %871 = vmatmul.bf16.gmra.mxu0 %v542
        %v872 = vpop.f32.mrf.mxu0
        %v873 = vadd.f32 %v320, %v872
        %v874 = vpop.f32.mrf.mxu0
        %v875 = vadd.f32 %v320, %v874
        %876 = vmatmul.bf16.gmra.mxu0 %v545
        %v877 = vpop.f32.mrf.mxu0
        %v878 = vadd.f32 %v320, %v877
        %v879 = vpop.f32.mrf.mxu0
        %v880 = vadd.f32 %v320, %v879
        %881 = vmatmul.bf16.gmra.mxu0 %v548
        %v882 = vpop.f32.mrf.mxu0
        %v883 = vadd.f32 %v320, %v882
        %v884 = vpop.f32.mrf.mxu0
        %v885 = vadd.f32 %v320, %v884
        %886 = vmatmul.bf16.gmra.mxu0 %v551
        %v887 = vpop.f32.mrf.mxu0
        %v888 = vadd.f32 %v320, %v887
        %v889 = vpop.f32.mrf.mxu0
        %v890 = vadd.f32 %v320, %v889
        %891 = vmatmul.bf16.gmra.mxu0 %v554
        %v892 = vpop.f32.mrf.mxu0
        %v893 = vadd.f32 %v320, %v892
        %v894 = vpop.f32.mrf.mxu0
        %v895 = vadd.f32 %v320, %v894
        %896 = vmatmul.bf16.gmra.mxu0 %v557
        %v897 = vpop.f32.mrf.mxu0
        %v898 = vadd.f32 %v320, %v897
        %v899 = vpop.f32.mrf.mxu0
        %v900 = vadd.f32 %v320, %v899
        %901 = vdwg.mxu0
        %902 = vmatpush.bf16.msra.mxu0 0
        %903 = vmatpush.bf16.msra.mxu0 0
        %904 = vmatpush.bf16.msra.mxu0 0
        %905 = vmatpush.bf16.msra.mxu0 0
        %906 = vmatpush.bf16.msra.mxu0 0
        %907 = vmatpush.bf16.msra.mxu0 0
        %908 = vmatpush.bf16.msra.mxu0 %v493
        %909 = vmatpush.bf16.msra.mxu0 %v477
        %910 = vmatmul.bf16.gmra.mxu0 %v536
        %v911 = vpop.f32.mrf.mxu0
        %v912 = vadd.f32 %v321, %v911
        %v913 = vpop.f32.mrf.mxu0
        %v914 = vadd.f32 %v321, %v913
        %915 = vmatmul.bf16.gmra.mxu0 %v539
        %v916 = vpop.f32.mrf.mxu0
        %v917 = vadd.f32 %v321, %v916
        %v918 = vpop.f32.mrf.mxu0
        %v919 = vadd.f32 %v321, %v918
        %920 = vmatmul.bf16.gmra.mxu0 %v542
        %v921 = vpop.f32.mrf.mxu0
        %v922 = vadd.f32 %v321, %v921
        %v923 = vpop.f32.mrf.mxu0
        %v924 = vadd.f32 %v321, %v923
        %925 = vmatmul.bf16.gmra.mxu0 %v545
        %v926 = vpop.f32.mrf.mxu0
        %v927 = vadd.f32 %v321, %v926
        %v928 = vpop.f32.mrf.mxu0
        %v929 = vadd.f32 %v321, %v928
        %930 = vmatmul.bf16.gmra.mxu0 %v548
        %v931 = vpop.f32.mrf.mxu0
        %v932 = vadd.f32 %v321, %v931
        %v933 = vpop.f32.mrf.mxu0
        %v934 = vadd.f32 %v321, %v933
        %935 = vmatmul.bf16.gmra.mxu0 %v551
        %v936 = vpop.f32.mrf.mxu0
        %v937 = vadd.f32 %v321, %v936
        %v938 = vpop.f32.mrf.mxu0
        %v939 = vadd.f32 %v321, %v938
        %940 = vmatmul.bf16.gmra.mxu0 %v554
        %v941 = vpop.f32.mrf.mxu0
        %v942 = vadd.f32 %v321, %v941
        %v943 = vpop.f32.mrf.mxu0
        %v944 = vadd.f32 %v321, %v943
        %945 = vmatmul.bf16.gmra.mxu0 %v557
        %v946 = vpop.f32.mrf.mxu0
        %v947 = vadd.f32 %v321, %v946
        %v948 = vpop.f32.mrf.mxu0
        %v949 = vadd.f32 %v321, %v948
        %950 = vdwg.mxu0
        %951 = vmatpush.bf16.msra.mxu0 0
        %952 = vmatpush.bf16.msra.mxu0 0
        %953 = vmatpush.bf16.msra.mxu0 0
        %954 = vmatpush.bf16.msra.mxu0 0
        %955 = vmatpush.bf16.msra.mxu0 0
        %956 = vmatpush.bf16.msra.mxu0 0
        %957 = vmatpush.bf16.msra.mxu0 %v494
        %958 = vmatpush.bf16.msra.mxu0 %v478
        %959 = vmatmul.bf16.gmra.mxu0 %v536
        %v960 = vpop.f32.mrf.mxu0
        %v961 = vadd.f32 %v322, %v960
        %v962 = vpop.f32.mrf.mxu0
        %v963 = vadd.f32 %v322, %v962
        %964 = vmatmul.bf16.gmra.mxu0 %v539
        %v965 = vpop.f32.mrf.mxu0
        %v966 = vadd.f32 %v322, %v965
        %v967 = vpop.f32.mrf.mxu0
        %v968 = vadd.f32 %v322, %v967
        %969 = vmatmul.bf16.gmra.mxu0 %v542
        %v970 = vpop.f32.mrf.mxu0
        %v971 = vadd.f32 %v322, %v970
        %v972 = vpop.f32.mrf.mxu0
        %v973 = vadd.f32 %v322, %v972
        %974 = vmatmul.bf16.gmra.mxu0 %v545
        %v975 = vpop.f32.mrf.mxu0
        %v976 = vadd.f32 %v322, %v975
        %v977 = vpop.f32.mrf.mxu0
        %v978 = vadd.f32 %v322, %v977
        %979 = vmatmul.bf16.gmra.mxu0 %v548
        %v980 = vpop.f32.mrf.mxu0
        %v981 = vadd.f32 %v322, %v980
        %v982 = vpop.f32.mrf.mxu0
        %v983 = vadd.f32 %v322, %v982
        %984 = vmatmul.bf16.gmra.mxu0 %v551
        %v985 = vpop.f32.mrf.mxu0
        %v986 = vadd.f32 %v322, %v985
        %v987 = vpop.f32.mrf.mxu0
        %v988 = vadd.f32 %v322, %v987
        %989 = vmatmul.bf16.gmra.mxu0 %v554
        %v990 = vpop.f32.mrf.mxu0
        %v991 = vadd.f32 %v322, %v990
        %v992 = vpop.f32.mrf.mxu0
        %v993 = vadd.f32 %v322, %v992
        %994 = vmatmul.bf16.gmra.mxu0 %v557
        %v995 = vpop.f32.mrf.mxu0
        %v996 = vadd.f32 %v322, %v995
        %v997 = vpop.f32.mrf.mxu0
        %v998 = vadd.f32 %v322, %v997
        %999 = vdwg.mxu0
        %1000 = vmatpush.bf16.msra.mxu0 0
        %1001 = vmatpush.bf16.msra.mxu0 0
        %1002 = vmatpush.bf16.msra.mxu0 0
        %1003 = vmatpush.bf16.msra.mxu0 0
        %1004 = vmatpush.bf16.msra.mxu0 0
        %1005 = vmatpush.bf16.msra.mxu0 0
        %1006 = vmatpush.bf16.msra.mxu0 %v495
        %1007 = vmatpush.bf16.msra.mxu0 %v479
        %1008 = vmatmul.bf16.gmra.mxu0 %v536
        %v1009 = vpop.f32.mrf.mxu0
        %v1010 = vadd.f32 %v323, %v1009
        %v1011 = vpop.f32.mrf.mxu0
        %v1012 = vadd.f32 %v323, %v1011
        %1013 = vmatmul.bf16.gmra.mxu0 %v539
        %v1014 = vpop.f32.mrf.mxu0
        %v1015 = vadd.f32 %v323, %v1014
        %v1016 = vpop.f32.mrf.mxu0
        %v1017 = vadd.f32 %v323, %v1016
        %1018 = vmatmul.bf16.gmra.mxu0 %v542
        %v1019 = vpop.f32.mrf.mxu0
        %v1020 = vadd.f32 %v323, %v1019
        %v1021 = vpop.f32.mrf.mxu0
        %v1022 = vadd.f32 %v323, %v1021
        %1023 = vmatmul.bf16.gmra.mxu0 %v545
        %v1024 = vpop.f32.mrf.mxu0
        %v1025 = vadd.f32 %v323, %v1024
        %v1026 = vpop.f32.mrf.mxu0
        %v1027 = vadd.f32 %v323, %v1026
        %1028 = vmatmul.bf16.gmra.mxu0 %v548
        %v1029 = vpop.f32.mrf.mxu0
        %v1030 = vadd.f32 %v323, %v1029
        %v1031 = vpop.f32.mrf.mxu0
        %v1032 = vadd.f32 %v323, %v1031
        %1033 = vmatmul.bf16.gmra.mxu0 %v551
        %v1034 = vpop.f32.mrf.mxu0
        %v1035 = vadd.f32 %v323, %v1034
        %v1036 = vpop.f32.mrf.mxu0
        %v1037 = vadd.f32 %v323, %v1036
        %1038 = vmatmul.bf16.gmra.mxu0 %v554
        %v1039 = vpop.f32.mrf.mxu0
        %v1040 = vadd.f32 %v323, %v1039
        %v1041 = vpop.f32.mrf.mxu0
        %v1042 = vadd.f32 %v323, %v1041
        %1043 = vmatmul.bf16.gmra.mxu0 %v557
        %v1044 = vpop.f32.mrf.mxu0
        %v1045 = vadd.f32 %v323, %v1044
        %v1046 = vpop.f32.mrf.mxu0
        %v1047 = vadd.f32 %v323, %v1046
        %1048 = vdwg.mxu0
        %1049 = vmatpush.bf16.msra.mxu0 0
        %1050 = vmatpush.bf16.msra.mxu0 0
        %1051 = vmatpush.bf16.msra.mxu0 0
        %1052 = vmatpush.bf16.msra.mxu0 0
        %1053 = vmatpush.bf16.msra.mxu0 0
        %1054 = vmatpush.bf16.msra.mxu0 0
        %1055 = vmatpush.bf16.msra.mxu0 %v496
        %1056 = vmatpush.bf16.msra.mxu0 %v480
        %1057 = vmatmul.bf16.gmra.mxu0 %v536
        %v1058 = vpop.f32.mrf.mxu0
        %v1059 = vadd.f32 %v324, %v1058
        %v1060 = vpop.f32.mrf.mxu0
        %v1061 = vadd.f32 %v324, %v1060
        %1062 = vmatmul.bf16.gmra.mxu0 %v539
        %v1063 = vpop.f32.mrf.mxu0
        %v1064 = vadd.f32 %v324, %v1063
        %v1065 = vpop.f32.mrf.mxu0
        %v1066 = vadd.f32 %v324, %v1065
        %1067 = vmatmul.bf16.gmra.mxu0 %v542
        %v1068 = vpop.f32.mrf.mxu0
        %v1069 = vadd.f32 %v324, %v1068
        %v1070 = vpop.f32.mrf.mxu0
        %v1071 = vadd.f32 %v324, %v1070
        %1072 = vmatmul.bf16.gmra.mxu0 %v545
        %v1073 = vpop.f32.mrf.mxu0
        %v1074 = vadd.f32 %v324, %v1073
        %v1075 = vpop.f32.mrf.mxu0
        %v1076 = vadd.f32 %v324, %v1075
        %1077 = vmatmul.bf16.gmra.mxu0 %v548
        %v1078 = vpop.f32.mrf.mxu0
        %v1079 = vadd.f32 %v324, %v1078
        %v1080 = vpop.f32.mrf.mxu0
        %v1081 = vadd.f32 %v324, %v1080
        %1082 = vmatmul.bf16.gmra.mxu0 %v551
        %v1083 = vpop.f32.mrf.mxu0
        %v1084 = vadd.f32 %v324, %v1083
        %v1085 = vpop.f32.mrf.mxu0
        %v1086 = vadd.f32 %v324, %v1085
        %1087 = vmatmul.bf16.gmra.mxu0 %v554
        %v1088 = vpop.f32.mrf.mxu0
        %v1089 = vadd.f32 %v324, %v1088
        %v1090 = vpop.f32.mrf.mxu0
        %v1091 = vadd.f32 %v324, %v1090
        %1092 = vmatmul.bf16.gmra.mxu0 %v557
        %v1093 = vpop.f32.mrf.mxu0
        %v1094 = vadd.f32 %v324, %v1093
        %v1095 = vpop.f32.mrf.mxu0
        %v1096 = vadd.f32 %v324, %v1095
        %1097 = vdwg.mxu0
        %1098 = vmatpush.bf16.msra.mxu0 0
        %1099 = vmatpush.bf16.msra.mxu0 0
        %1100 = vmatpush.bf16.msra.mxu0 0
        %1101 = vmatpush.bf16.msra.mxu0 0
        %1102 = vmatpush.bf16.msra.mxu0 0
        %1103 = vmatpush.bf16.msra.mxu0 0
        %1104 = vmatpush.bf16.msra.mxu0 %v497
        %1105 = vmatpush.bf16.msra.mxu0 %v481
        %1106 = vmatmul.bf16.gmra.mxu0 %v536
        %v1107 = vpop.f32.mrf.mxu0
        %v1108 = vadd.f32 %v325, %v1107
        %v1109 = vpop.f32.mrf.mxu0
        %v1110 = vadd.f32 %v325, %v1109
        %1111 = vmatmul.bf16.gmra.mxu0 %v539
        %v1112 = vpop.f32.mrf.mxu0
        %v1113 = vadd.f32 %v325, %v1112
        %v1114 = vpop.f32.mrf.mxu0
        %v1115 = vadd.f32 %v325, %v1114
        %1116 = vmatmul.bf16.gmra.mxu0 %v542
        %v1117 = vpop.f32.mrf.mxu0
        %v1118 = vadd.f32 %v325, %v1117
        %v1119 = vpop.f32.mrf.mxu0
        %v1120 = vadd.f32 %v325, %v1119
        %1121 = vmatmul.bf16.gmra.mxu0 %v545
        %v1122 = vpop.f32.mrf.mxu0
        %v1123 = vadd.f32 %v325, %v1122
        %v1124 = vpop.f32.mrf.mxu0
        %v1125 = vadd.f32 %v325, %v1124
        %1126 = vmatmul.bf16.gmra.mxu0 %v548
        %v1127 = vpop.f32.mrf.mxu0
        %v1128 = vadd.f32 %v325, %v1127
        %v1129 = vpop.f32.mrf.mxu0
        %v1130 = vadd.f32 %v325, %v1129
        %1131 = vmatmul.bf16.gmra.mxu0 %v551
        %v1132 = vpop.f32.mrf.mxu0
        %v1133 = vadd.f32 %v325, %v1132
        %v1134 = vpop.f32.mrf.mxu0
        %v1135 = vadd.f32 %v325, %v1134
        %1136 = vmatmul.bf16.gmra.mxu0 %v554
        %v1137 = vpop.f32.mrf.mxu0
        %v1138 = vadd.f32 %v325, %v1137
        %v1139 = vpop.f32.mrf.mxu0
        %v1140 = vadd.f32 %v325, %v1139
        %1141 = vmatmul.bf16.gmra.mxu0 %v557
        %v1142 = vpop.f32.mrf.mxu0
        %v1143 = vadd.f32 %v325, %v1142
        %v1144 = vpop.f32.mrf.mxu0
        %v1145 = vadd.f32 %v325, %v1144
        %1146 = vdwg.mxu0
        %1147 = vmatpush.bf16.msra.mxu0 0
        %1148 = vmatpush.bf16.msra.mxu0 0
        %1149 = vmatpush.bf16.msra.mxu0 0
        %1150 = vmatpush.bf16.msra.mxu0 0
        %1151 = vmatpush.bf16.msra.mxu0 0
        %1152 = vmatpush.bf16.msra.mxu0 0
        %1153 = vmatpush.bf16.msra.mxu0 %v498
        %1154 = vmatpush.bf16.msra.mxu0 %v482
        %1155 = vmatmul.bf16.gmra.mxu0 %v536
        %v1156 = vpop.f32.mrf.mxu0
        %v1157 = vadd.f32 %v326, %v1156
        %v1158 = vpop.f32.mrf.mxu0
        %v1159 = vadd.f32 %v326, %v1158
        %1160 = vmatmul.bf16.gmra.mxu0 %v539
        %v1161 = vpop.f32.mrf.mxu0
        %v1162 = vadd.f32 %v326, %v1161
        %v1163 = vpop.f32.mrf.mxu0
        %v1164 = vadd.f32 %v326, %v1163
        %1165 = vmatmul.bf16.gmra.mxu0 %v542
        %v1166 = vpop.f32.mrf.mxu0
        %v1167 = vadd.f32 %v326, %v1166
        %v1168 = vpop.f32.mrf.mxu0
        %v1169 = vadd.f32 %v326, %v1168
        %1170 = vmatmul.bf16.gmra.mxu0 %v545
        %v1171 = vpop.f32.mrf.mxu0
        %v1172 = vadd.f32 %v326, %v1171
        %v1173 = vpop.f32.mrf.mxu0
        %v1174 = vadd.f32 %v326, %v1173
        %1175 = vmatmul.bf16.gmra.mxu0 %v548
        %v1176 = vpop.f32.mrf.mxu0
        %v1177 = vadd.f32 %v326, %v1176
        %v1178 = vpop.f32.mrf.mxu0
        %v1179 = vadd.f32 %v326, %v1178
        %1180 = vmatmul.bf16.gmra.mxu0 %v551
        %v1181 = vpop.f32.mrf.mxu0
        %v1182 = vadd.f32 %v326, %v1181
        %v1183 = vpop.f32.mrf.mxu0
        %v1184 = vadd.f32 %v326, %v1183
        %1185 = vmatmul.bf16.gmra.mxu0 %v554
        %v1186 = vpop.f32.mrf.mxu0
        %v1187 = vadd.f32 %v326, %v1186
        %v1188 = vpop.f32.mrf.mxu0
        %v1189 = vadd.f32 %v326, %v1188
        %1190 = vmatmul.bf16.gmra.mxu0 %v557
        %v1191 = vpop.f32.mrf.mxu0
        %v1192 = vadd.f32 %v326, %v1191
        %v1193 = vpop.f32.mrf.mxu0
        %v1194 = vadd.f32 %v326, %v1193
        %1195 = vdwg.mxu0
        %1196 = vmatpush.bf16.msra.mxu0 0
        %1197 = vmatpush.bf16.msra.mxu0 0
        %1198 = vmatpush.bf16.msra.mxu0 0
        %1199 = vmatpush.bf16.msra.mxu0 0
        %1200 = vmatpush.bf16.msra.mxu0 0
        %1201 = vmatpush.bf16.msra.mxu0 0
        %1202 = vmatpush.bf16.msra.mxu0 %v499
        %1203 = vmatpush.bf16.msra.mxu0 %v483
        %1204 = vmatmul.bf16.gmra.mxu0 %v536
        %v1205 = vpop.f32.mrf.mxu0
        %v1206 = vadd.f32 %v327, %v1205
        %v1207 = vpop.f32.mrf.mxu0
        %v1208 = vadd.f32 %v327, %v1207
        %1209 = vmatmul.bf16.gmra.mxu0 %v539
        %v1210 = vpop.f32.mrf.mxu0
        %v1211 = vadd.f32 %v327, %v1210
        %v1212 = vpop.f32.mrf.mxu0
        %v1213 = vadd.f32 %v327, %v1212
        %1214 = vmatmul.bf16.gmra.mxu0 %v542
        %v1215 = vpop.f32.mrf.mxu0
        %v1216 = vadd.f32 %v327, %v1215
        %v1217 = vpop.f32.mrf.mxu0
        %v1218 = vadd.f32 %v327, %v1217
        %1219 = vmatmul.bf16.gmra.mxu0 %v545
        %v1220 = vpop.f32.mrf.mxu0
        %v1221 = vadd.f32 %v327, %v1220
        %v1222 = vpop.f32.mrf.mxu0
        %v1223 = vadd.f32 %v327, %v1222
        %1224 = vmatmul.bf16.gmra.mxu0 %v548
        %v1225 = vpop.f32.mrf.mxu0
        %v1226 = vadd.f32 %v327, %v1225
        %v1227 = vpop.f32.mrf.mxu0
        %v1228 = vadd.f32 %v327, %v1227
        %1229 = vmatmul.bf16.gmra.mxu0 %v551
        %v1230 = vpop.f32.mrf.mxu0
        %v1231 = vadd.f32 %v327, %v1230
        %v1232 = vpop.f32.mrf.mxu0
        %v1233 = vadd.f32 %v327, %v1232
        %1234 = vmatmul.bf16.gmra.mxu0 %v554
        %v1235 = vpop.f32.mrf.mxu0
        %v1236 = vadd.f32 %v327, %v1235
        %v1237 = vpop.f32.mrf.mxu0
        %v1238 = vadd.f32 %v327, %v1237
        %1239 = vmatmul.bf16.gmra.mxu0 %v557
        %v1240 = vpop.f32.mrf.mxu0
        %v1241 = vadd.f32 %v327, %v1240
        %v1242 = vpop.f32.mrf.mxu0
        %v1243 = vadd.f32 %v327, %v1242
        %1244 = vdwg.mxu0
        %1245 = vmatpush.bf16.msra.mxu0 0
        %1246 = vmatpush.bf16.msra.mxu0 0
        %1247 = vmatpush.bf16.msra.mxu0 0
        %1248 = vmatpush.bf16.msra.mxu0 0
        %1249 = vmatpush.bf16.msra.mxu0 0
        %1250 = vmatpush.bf16.msra.mxu0 0
        %1251 = vmatpush.bf16.msra.mxu0 %v500
        %1252 = vmatpush.bf16.msra.mxu0 %v484
        %1253 = vmatmul.bf16.gmra.mxu0 %v536
        %v1254 = vpop.f32.mrf.mxu0
        %v1255 = vadd.f32 %v328, %v1254
        %v1256 = vpop.f32.mrf.mxu0
        %v1257 = vadd.f32 %v328, %v1256
        %1258 = vmatmul.bf16.gmra.mxu0 %v539
        %v1259 = vpop.f32.mrf.mxu0
        %v1260 = vadd.f32 %v328, %v1259
        %v1261 = vpop.f32.mrf.mxu0
        %v1262 = vadd.f32 %v328, %v1261
        %1263 = vmatmul.bf16.gmra.mxu0 %v542
        %v1264 = vpop.f32.mrf.mxu0
        %v1265 = vadd.f32 %v328, %v1264
        %v1266 = vpop.f32.mrf.mxu0
        %v1267 = vadd.f32 %v328, %v1266
        %1268 = vmatmul.bf16.gmra.mxu0 %v545
        %v1269 = vpop.f32.mrf.mxu0
        %v1270 = vadd.f32 %v328, %v1269
        %v1271 = vpop.f32.mrf.mxu0
        %v1272 = vadd.f32 %v328, %v1271
        %1273 = vmatmul.bf16.gmra.mxu0 %v548
        %v1274 = vpop.f32.mrf.mxu0
        %v1275 = vadd.f32 %v328, %v1274
        %v1276 = vpop.f32.mrf.mxu0
        %v1277 = vadd.f32 %v328, %v1276
        %1278 = vmatmul.bf16.gmra.mxu0 %v551
        %v1279 = vpop.f32.mrf.mxu0
        %v1280 = vadd.f32 %v328, %v1279
        %v1281 = vpop.f32.mrf.mxu0
        %v1282 = vadd.f32 %v328, %v1281
        %1283 = vmatmul.bf16.gmra.mxu0 %v554
        %v1284 = vpop.f32.mrf.mxu0
        %v1285 = vadd.f32 %v328, %v1284
        %v1286 = vpop.f32.mrf.mxu0
        %v1287 = vadd.f32 %v328, %v1286
        %1288 = vmatmul.bf16.gmra.mxu0 %v557
        %v1289 = vpop.f32.mrf.mxu0
        %v1290 = vadd.f32 %v328, %v1289
        %v1291 = vpop.f32.mrf.mxu0
        %v1292 = vadd.f32 %v328, %v1291
        %1293 = vdwg.mxu0
        %1294 = vmatpush.bf16.msra.mxu0 0
        %1295 = vmatpush.bf16.msra.mxu0 0
        %1296 = vmatpush.bf16.msra.mxu0 0
        %1297 = vmatpush.bf16.msra.mxu0 0
        %1298 = vmatpush.bf16.msra.mxu0 0
        %1299 = vmatpush.bf16.msra.mxu0 0
        %1300 = vmatpush.bf16.msra.mxu0 %v501
        %1301 = vmatpush.bf16.msra.mxu0 %v485
        %1302 = vmatmul.bf16.gmra.mxu0 %v536
        %v1303 = vpop.f32.mrf.mxu0
        %v1304 = vadd.f32 %v329, %v1303
        %v1305 = vpop.f32.mrf.mxu0
        %v1306 = vadd.f32 %v329, %v1305
        %1307 = vmatmul.bf16.gmra.mxu0 %v539
        %v1308 = vpop.f32.mrf.mxu0
        %v1309 = vadd.f32 %v329, %v1308
        %v1310 = vpop.f32.mrf.mxu0
        %v1311 = vadd.f32 %v329, %v1310
        %1312 = vmatmul.bf16.gmra.mxu0 %v542
        %v1313 = vpop.f32.mrf.mxu0
        %v1314 = vadd.f32 %v329, %v1313
        %v1315 = vpop.f32.mrf.mxu0
        %v1316 = vadd.f32 %v329, %v1315
        %1317 = vmatmul.bf16.gmra.mxu0 %v545
        %v1318 = vpop.f32.mrf.mxu0
        %v1319 = vadd.f32 %v329, %v1318
        %v1320 = vpop.f32.mrf.mxu0
        %v1321 = vadd.f32 %v329, %v1320
        %1322 = vmatmul.bf16.gmra.mxu0 %v548
        %v1323 = vpop.f32.mrf.mxu0
        %v1324 = vadd.f32 %v329, %v1323
        %v1325 = vpop.f32.mrf.mxu0
        %v1326 = vadd.f32 %v329, %v1325
        %1327 = vmatmul.bf16.gmra.mxu0 %v551
        %v1328 = vpop.f32.mrf.mxu0
        %v1329 = vadd.f32 %v329, %v1328
        %v1330 = vpop.f32.mrf.mxu0
        %v1331 = vadd.f32 %v329, %v1330
        %1332 = vmatmul.bf16.gmra.mxu0 %v554
        %v1333 = vpop.f32.mrf.mxu0
        %v1334 = vadd.f32 %v329, %v1333
        %v1335 = vpop.f32.mrf.mxu0
        %v1336 = vadd.f32 %v329, %v1335
        %1337 = vmatmul.bf16.gmra.mxu0 %v557
        %v1338 = vpop.f32.mrf.mxu0
        %v1339 = vadd.f32 %v329, %v1338
        %v1340 = vpop.f32.mrf.mxu0
        %v1341 = vadd.f32 %v329, %v1340
        %1342 = vdwg.mxu0
        %v1343 = vmax.f32 %v569, 0.0
        %v1344 = vmax.f32 %v618, 0.0
        %v1345 = vmax.f32 %v667, 0.0
        %v1346 = vmax.f32 %v716, 0.0
        %v1347 = vmax.f32 %v765, 0.0
        %v1348 = vmax.f32 %v814, 0.0
        %v1349 = vmax.f32 %v863, 0.0
        %v1350 = vmax.f32 %v912, 0.0
        %v1351 = vmax.f32 %v961, 0.0
        %v1352 = vmax.f32 %v1010, 0.0
        %v1353 = vmax.f32 %v1059, 0.0
        %v1354 = vmax.f32 %v1108, 0.0
        %v1355 = vmax.f32 %v1157, 0.0
        %v1356 = vmax.f32 %v1206, 0.0
        %v1357 = vmax.f32 %v1255, 0.0
        %v1358 = vmax.f32 %v1304, 0.0
        %v1359 = vmax.f32 %v571, 0.0
        %v1360 = vmax.f32 %v620, 0.0
        %v1361 = vmax.f32 %v669, 0.0
        %v1362 = vmax.f32 %v718, 0.0
        %v1363 = vmax.f32 %v767, 0.0
        %v1364 = vmax.f32 %v816, 0.0
        %v1365 = vmax.f32 %v865, 0.0
        %v1366 = vmax.f32 %v914, 0.0
        %v1367 = vmax.f32 %v963, 0.0
        %v1368 = vmax.f32 %v1012, 0.0
        %v1369 = vmax.f32 %v1061, 0.0
        %v1370 = vmax.f32 %v1110, 0.0
        %v1371 = vmax.f32 %v1159, 0.0
        %v1372 = vmax.f32 %v1208, 0.0
        %v1373 = vmax.f32 %v1257, 0.0
        %v1374 = vmax.f32 %v1306, 0.0
        %v1375 = vmax.f32 %v574, 0.0
        %v1376 = vmax.f32 %v623, 0.0
        %v1377 = vmax.f32 %v672, 0.0
        %v1378 = vmax.f32 %v721, 0.0
        %v1379 = vmax.f32 %v770, 0.0
        %v1380 = vmax.f32 %v819, 0.0
        %v1381 = vmax.f32 %v868, 0.0
        %v1382 = vmax.f32 %v917, 0.0
        %v1383 = vmax.f32 %v966, 0.0
        %v1384 = vmax.f32 %v1015, 0.0
        %v1385 = vmax.f32 %v1064, 0.0
        %v1386 = vmax.f32 %v1113, 0.0
        %v1387 = vmax.f32 %v1162, 0.0
        %v1388 = vmax.f32 %v1211, 0.0
        %v1389 = vmax.f32 %v1260, 0.0
        %v1390 = vmax.f32 %v1309, 0.0
        %v1391 = vmax.f32 %v576, 0.0
        %v1392 = vmax.f32 %v625, 0.0
        %v1393 = vmax.f32 %v674, 0.0
        %v1394 = vmax.f32 %v723, 0.0
        %v1395 = vmax.f32 %v772, 0.0
        %v1396 = vmax.f32 %v821, 0.0
        %v1397 = vmax.f32 %v870, 0.0
        %v1398 = vmax.f32 %v919, 0.0
        %v1399 = vmax.f32 %v968, 0.0
        %v1400 = vmax.f32 %v1017, 0.0
        %v1401 = vmax.f32 %v1066, 0.0
        %v1402 = vmax.f32 %v1115, 0.0
        %v1403 = vmax.f32 %v1164, 0.0
        %v1404 = vmax.f32 %v1213, 0.0
        %v1405 = vmax.f32 %v1262, 0.0
        %v1406 = vmax.f32 %v1311, 0.0
        %v1407 = vmax.f32 %v579, 0.0
        %v1408 = vmax.f32 %v628, 0.0
        %v1409 = vmax.f32 %v677, 0.0
        %v1410 = vmax.f32 %v726, 0.0
        %v1411 = vmax.f32 %v775, 0.0
        %v1412 = vmax.f32 %v824, 0.0
        %v1413 = vmax.f32 %v873, 0.0
        %v1414 = vmax.f32 %v922, 0.0
        %v1415 = vmax.f32 %v971, 0.0
        %v1416 = vmax.f32 %v1020, 0.0
        %v1417 = vmax.f32 %v1069, 0.0
        %v1418 = vmax.f32 %v1118, 0.0
        %v1419 = vmax.f32 %v1167, 0.0
        %v1420 = vmax.f32 %v1216, 0.0
        %v1421 = vmax.f32 %v1265, 0.0
        %v1422 = vmax.f32 %v1314, 0.0
        %v1423 = vmax.f32 %v581, 0.0
        %v1424 = vmax.f32 %v630, 0.0
        %v1425 = vmax.f32 %v679, 0.0
        %v1426 = vmax.f32 %v728, 0.0
        %v1427 = vmax.f32 %v777, 0.0
        %v1428 = vmax.f32 %v826, 0.0
        %v1429 = vmax.f32 %v875, 0.0
        %v1430 = vmax.f32 %v924, 0.0
        %v1431 = vmax.f32 %v973, 0.0
        %v1432 = vmax.f32 %v1022, 0.0
        %v1433 = vmax.f32 %v1071, 0.0
        %v1434 = vmax.f32 %v1120, 0.0
        %v1435 = vmax.f32 %v1169, 0.0
        %v1436 = vmax.f32 %v1218, 0.0
        %v1437 = vmax.f32 %v1267, 0.0
        %v1438 = vmax.f32 %v1316, 0.0
        %v1439 = vmax.f32 %v584, 0.0
        %v1440 = vmax.f32 %v633, 0.0
        %v1441 = vmax.f32 %v682, 0.0
        %v1442 = vmax.f32 %v731, 0.0
        %v1443 = vmax.f32 %v780, 0.0
        %v1444 = vmax.f32 %v829, 0.0
        %v1445 = vmax.f32 %v878, 0.0
        %v1446 = vmax.f32 %v927, 0.0
        %v1447 = vmax.f32 %v976, 0.0
        %v1448 = vmax.f32 %v1025, 0.0
        %v1449 = vmax.f32 %v1074, 0.0
        %v1450 = vmax.f32 %v1123, 0.0
        %v1451 = vmax.f32 %v1172, 0.0
        %v1452 = vmax.f32 %v1221, 0.0
        %v1453 = vmax.f32 %v1270, 0.0
        %v1454 = vmax.f32 %v1319, 0.0
        %v1455 = vmax.f32 %v586, 0.0
        %v1456 = vmax.f32 %v635, 0.0
        %v1457 = vmax.f32 %v684, 0.0
        %v1458 = vmax.f32 %v733, 0.0
        %v1459 = vmax.f32 %v782, 0.0
        %v1460 = vmax.f32 %v831, 0.0
        %v1461 = vmax.f32 %v880, 0.0
        %v1462 = vmax.f32 %v929, 0.0
        %v1463 = vmax.f32 %v978, 0.0
        %v1464 = vmax.f32 %v1027, 0.0
        %v1465 = vmax.f32 %v1076, 0.0
        %v1466 = vmax.f32 %v1125, 0.0
        %v1467 = vmax.f32 %v1174, 0.0
        %v1468 = vmax.f32 %v1223, 0.0
        %v1469 = vmax.f32 %v1272, 0.0
        %v1470 = vmax.f32 %v1321, 0.0
        %v1471 = vmax.f32 %v589, 0.0
        %v1472 = vmax.f32 %v638, 0.0
        %v1473 = vmax.f32 %v687, 0.0
        %v1474 = vmax.f32 %v736, 0.0
        %v1475 = vmax.f32 %v785, 0.0
        %v1476 = vmax.f32 %v834, 0.0
        %v1477 = vmax.f32 %v883, 0.0
        %v1478 = vmax.f32 %v932, 0.0
        %v1479 = vmax.f32 %v981, 0.0
        %v1480 = vmax.f32 %v1030, 0.0
        %v1481 = vmax.f32 %v1079, 0.0
        %v1482 = vmax.f32 %v1128, 0.0
        %v1483 = vmax.f32 %v1177, 0.0
        %v1484 = vmax.f32 %v1226, 0.0
        %v1485 = vmax.f32 %v1275, 0.0
        %v1486 = vmax.f32 %v1324, 0.0
        %v1487 = vmax.f32 %v591, 0.0
        %v1488 = vmax.f32 %v640, 0.0
        %v1489 = vmax.f32 %v689, 0.0
        %v1490 = vmax.f32 %v738, 0.0
        %v1491 = vmax.f32 %v787, 0.0
        %v1492 = vmax.f32 %v836, 0.0
        %v1493 = vmax.f32 %v885, 0.0
        %v1494 = vmax.f32 %v934, 0.0
        %v1495 = vmax.f32 %v983, 0.0
        %v1496 = vmax.f32 %v1032, 0.0
        %v1497 = vmax.f32 %v1081, 0.0
        %v1498 = vmax.f32 %v1130, 0.0
        %v1499 = vmax.f32 %v1179, 0.0
        %v1500 = vmax.f32 %v1228, 0.0
        %v1501 = vmax.f32 %v1277, 0.0
        %v1502 = vmax.f32 %v1326, 0.0
        %v1503 = vmax.f32 %v594, 0.0
        %v1504 = vmax.f32 %v643, 0.0
        %v1505 = vmax.f32 %v692, 0.0
        %v1506 = vmax.f32 %v741, 0.0
        %v1507 = vmax.f32 %v790, 0.0
        %v1508 = vmax.f32 %v839, 0.0
        %v1509 = vmax.f32 %v888, 0.0
        %v1510 = vmax.f32 %v937, 0.0
        %v1511 = vmax.f32 %v986, 0.0
        %v1512 = vmax.f32 %v1035, 0.0
        %v1513 = vmax.f32 %v1084, 0.0
        %v1514 = vmax.f32 %v1133, 0.0
        %v1515 = vmax.f32 %v1182, 0.0
        %v1516 = vmax.f32 %v1231, 0.0
        %v1517 = vmax.f32 %v1280, 0.0
        %v1518 = vmax.f32 %v1329, 0.0
        %v1519 = vmax.f32 %v596, 0.0
        %v1520 = vmax.f32 %v645, 0.0
        %v1521 = vmax.f32 %v694, 0.0
        %v1522 = vmax.f32 %v743, 0.0
        %v1523 = vmax.f32 %v792, 0.0
        %v1524 = vmax.f32 %v841, 0.0
        %v1525 = vmax.f32 %v890, 0.0
        %v1526 = vmax.f32 %v939, 0.0
        %v1527 = vmax.f32 %v988, 0.0
        %v1528 = vmax.f32 %v1037, 0.0
        %v1529 = vmax.f32 %v1086, 0.0
        %v1530 = vmax.f32 %v1135, 0.0
        %v1531 = vmax.f32 %v1184, 0.0
        %v1532 = vmax.f32 %v1233, 0.0
        %v1533 = vmax.f32 %v1282, 0.0
        %v1534 = vmax.f32 %v1331, 0.0
        %v1535 = vmax.f32 %v599, 0.0
        %v1536 = vmax.f32 %v648, 0.0
        %v1537 = vmax.f32 %v697, 0.0
        %v1538 = vmax.f32 %v746, 0.0
        %v1539 = vmax.f32 %v795, 0.0
        %v1540 = vmax.f32 %v844, 0.0
        %v1541 = vmax.f32 %v893, 0.0
        %v1542 = vmax.f32 %v942, 0.0
        %v1543 = vmax.f32 %v991, 0.0
        %v1544 = vmax.f32 %v1040, 0.0
        %v1545 = vmax.f32 %v1089, 0.0
        %v1546 = vmax.f32 %v1138, 0.0
        %v1547 = vmax.f32 %v1187, 0.0
        %v1548 = vmax.f32 %v1236, 0.0
        %v1549 = vmax.f32 %v1285, 0.0
        %v1550 = vmax.f32 %v1334, 0.0
        %v1551 = vmax.f32 %v601, 0.0
        %v1552 = vmax.f32 %v650, 0.0
        %v1553 = vmax.f32 %v699, 0.0
        %v1554 = vmax.f32 %v748, 0.0
        %v1555 = vmax.f32 %v797, 0.0
        %v1556 = vmax.f32 %v846, 0.0
        %v1557 = vmax.f32 %v895, 0.0
        %v1558 = vmax.f32 %v944, 0.0
        %v1559 = vmax.f32 %v993, 0.0
        %v1560 = vmax.f32 %v1042, 0.0
        %v1561 = vmax.f32 %v1091, 0.0
        %v1562 = vmax.f32 %v1140, 0.0
        %v1563 = vmax.f32 %v1189, 0.0
        %v1564 = vmax.f32 %v1238, 0.0
        %v1565 = vmax.f32 %v1287, 0.0
        %v1566 = vmax.f32 %v1336, 0.0
        %v1567 = vmax.f32 %v604, 0.0
        %v1568 = vmax.f32 %v653, 0.0
        %v1569 = vmax.f32 %v702, 0.0
        %v1570 = vmax.f32 %v751, 0.0
        %v1571 = vmax.f32 %v800, 0.0
        %v1572 = vmax.f32 %v849, 0.0
        %v1573 = vmax.f32 %v898, 0.0
        %v1574 = vmax.f32 %v947, 0.0
        %v1575 = vmax.f32 %v996, 0.0
        %v1576 = vmax.f32 %v1045, 0.0
        %v1577 = vmax.f32 %v1094, 0.0
        %v1578 = vmax.f32 %v1143, 0.0
        %v1579 = vmax.f32 %v1192, 0.0
        %v1580 = vmax.f32 %v1241, 0.0
        %v1581 = vmax.f32 %v1290, 0.0
        %v1582 = vmax.f32 %v1339, 0.0
        %v1583 = vmax.f32 %v606, 0.0
        %v1584 = vmax.f32 %v655, 0.0
        %v1585 = vmax.f32 %v704, 0.0
        %v1586 = vmax.f32 %v753, 0.0
        %v1587 = vmax.f32 %v802, 0.0
        %v1588 = vmax.f32 %v851, 0.0
        %v1589 = vmax.f32 %v900, 0.0
        %v1590 = vmax.f32 %v949, 0.0
        %v1591 = vmax.f32 %v998, 0.0
        %v1592 = vmax.f32 %v1047, 0.0
        %v1593 = vmax.f32 %v1096, 0.0
        %v1594 = vmax.f32 %v1145, 0.0
        %v1595 = vmax.f32 %v1194, 0.0
        %v1596 = vmax.f32 %v1243, 0.0
        %v1597 = vmax.f32 %v1292, 0.0
        %v1598 = vmax.f32 %v1341, 0.0
        %s1599 = smul.u32 %s16, 128
        %v1600 = vlaneseq
        %v1601 = vand.u32 %v1600, 127
        %v1602 = vstv %s1599
        %v1603 = vadd.s32 %v1602, %v1601
        %v1604 = vlaneseq
        %v1605 = vshrl.u32 %v1604, 7
        %v1606 = vmul.u32 %v1605, 256
        %vm1607 = vcmp.ge.s32.totalorder %v1603, %v1606
        %v1608 = vadd.s32 %v1606, 256
        %vm1609 = vcmp.lt.s32.totalorder %v1603, %v1608
        %vm1610 = vmand %vm1607, %vm1609
        %v1611 = vsel %vm1610, 1, 0
        %v1612 = vcvt.s32.f32 %v1611
        %v1613 = vpack.c.bf16 %v1612, %v1612
        %v1614 = vld [vmem:[#allocation2] sm:$0xff]
        %v1615 = vld [vmem:[#allocation2 + $0x8] sm:$0xff]
        %v1616 = vld [vmem:[#allocation2 + $0x10] sm:$0xff]
        %v1617 = vld [vmem:[#allocation2 + $0x18] sm:$0xff]
        %v1618 = vpack.c.bf16 %v1359, %v1343
        %v1619 = vpack.c.bf16 %v1360, %v1344
        %v1620 = vpack.c.bf16 %v1361, %v1345
        %v1621 = vpack.c.bf16 %v1362, %v1346
        %v1622 = vpack.c.bf16 %v1363, %v1347
        %v1623 = vpack.c.bf16 %v1364, %v1348
        %v1624 = vpack.c.bf16 %v1365, %v1349
        %v1625 = vpack.c.bf16 %v1366, %v1350
        %v1626 = vpack.c.bf16 %v1367, %v1351
        %v1627 = vpack.c.bf16 %v1368, %v1352
        %v1628 = vpack.c.bf16 %v1369, %v1353
        %v1629 = vpack.c.bf16 %v1370, %v1354
        %v1630 = vpack.c.bf16 %v1371, %v1355
        %v1631 = vpack.c.bf16 %v1372, %v1356
        %v1632 = vpack.c.bf16 %v1373, %v1357
        %v1633 = vpack.c.bf16 %v1374, %v1358
        %v1634 = vpack.c.bf16 %v1391, %v1375
        %v1635 = vpack.c.bf16 %v1392, %v1376
        %v1636 = vpack.c.bf16 %v1393, %v1377
        %v1637 = vpack.c.bf16 %v1394, %v1378
        %v1638 = vpack.c.bf16 %v1395, %v1379
        %v1639 = vpack.c.bf16 %v1396, %v1380
        %v1640 = vpack.c.bf16 %v1397, %v1381
        %v1641 = vpack.c.bf16 %v1398, %v1382
        %v1642 = vpack.c.bf16 %v1399, %v1383
        %v1643 = vpack.c.bf16 %v1400, %v1384
        %v1644 = vpack.c.bf16 %v1401, %v1385
        %v1645 = vpack.c.bf16 %v1402, %v1386
        %v1646 = vpack.c.bf16 %v1403, %v1387
        %v1647 = vpack.c.bf16 %v1404, %v1388
        %v1648 = vpack.c.bf16 %v1405, %v1389
        %v1649 = vpack.c.bf16 %v1406, %v1390
        %v1650 = vpack.c.bf16 %v1423, %v1407
        %v1651 = vpack.c.bf16 %v1424, %v1408
        %v1652 = vpack.c.bf16 %v1425, %v1409
        %v1653 = vpack.c.bf16 %v1426, %v1410
        %v1654 = vpack.c.bf16 %v1427, %v1411
        %v1655 = vpack.c.bf16 %v1428, %v1412
        %v1656 = vpack.c.bf16 %v1429, %v1413
        %v1657 = vpack.c.bf16 %v1430, %v1414
        %v1658 = vpack.c.bf16 %v1431, %v1415
        %v1659 = vpack.c.bf16 %v1432, %v1416
        %v1660 = vpack.c.bf16 %v1433, %v1417
        %v1661 = vpack.c.bf16 %v1434, %v1418
        %v1662 = vpack.c.bf16 %v1435, %v1419
        %v1663 = vpack.c.bf16 %v1436, %v1420
        %v1664 = vpack.c.bf16 %v1437, %v1421
        %v1665 = vpack.c.bf16 %v1438, %v1422
        %v1666 = vpack.c.bf16 %v1455, %v1439
        %v1667 = vpack.c.bf16 %v1456, %v1440
        %v1668 = vpack.c.bf16 %v1457, %v1441
        %v1669 = vpack.c.bf16 %v1458, %v1442
        %v1670 = vpack.c.bf16 %v1459, %v1443
        %v1671 = vpack.c.bf16 %v1460, %v1444
        %v1672 = vpack.c.bf16 %v1461, %v1445
        %v1673 = vpack.c.bf16 %v1462, %v1446
        %v1674 = vpack.c.bf16 %v1463, %v1447
        %v1675 = vpack.c.bf16 %v1464, %v1448
        %v1676 = vpack.c.bf16 %v1465, %v1449
        %v1677 = vpack.c.bf16 %v1466, %v1450
        %v1678 = vpack.c.bf16 %v1467, %v1451
        %v1679 = vpack.c.bf16 %v1468, %v1452
        %v1680 = vpack.c.bf16 %v1469, %v1453
        %v1681 = vpack.c.bf16 %v1470, %v1454
        %v1682 = vpack.c.bf16 %v1487, %v1471
        %v1683 = vpack.c.bf16 %v1488, %v1472
        %v1684 = vpack.c.bf16 %v1489, %v1473
        %v1685 = vpack.c.bf16 %v1490, %v1474
        %v1686 = vpack.c.bf16 %v1491, %v1475
        %v1687 = vpack.c.bf16 %v1492, %v1476
        %v1688 = vpack.c.bf16 %v1493, %v1477
        %v1689 = vpack.c.bf16 %v1494, %v1478
        %v1690 = vpack.c.bf16 %v1495, %v1479
        %v1691 = vpack.c.bf16 %v1496, %v1480
        %v1692 = vpack.c.bf16 %v1497, %v1481
        %v1693 = vpack.c.bf16 %v1498, %v1482
        %v1694 = vpack.c.bf16 %v1499, %v1483
        %v1695 = vpack.c.bf16 %v1500, %v1484
        %v1696 = vpack.c.bf16 %v1501, %v1485
        %v1697 = vpack.c.bf16 %v1502, %v1486
        %v1698 = vpack.c.bf16 %v1519, %v1503
        %v1699 = vpack.c.bf16 %v1520, %v1504
        %v1700 = vpack.c.bf16 %v1521, %v1505
        %v1701 = vpack.c.bf16 %v1522, %v1506
        %v1702 = vpack.c.bf16 %v1523, %v1507
        %v1703 = vpack.c.bf16 %v1524, %v1508
        %v1704 = vpack.c.bf16 %v1525, %v1509
        %v1705 = vpack.c.bf16 %v1526, %v1510
        %v1706 = vpack.c.bf16 %v1527, %v1511
        %v1707 = vpack.c.bf16 %v1528, %v1512
        %v1708 = vpack.c.bf16 %v1529, %v1513
        %v1709 = vpack.c.bf16 %v1530, %v1514
        %v1710 = vpack.c.bf16 %v1531, %v1515
        %v1711 = vpack.c.bf16 %v1532, %v1516
        %v1712 = vpack.c.bf16 %v1533, %v1517
        %v1713 = vpack.c.bf16 %v1534, %v1518
        %v1714 = vpack.c.bf16 %v1551, %v1535
        %v1715 = vpack.c.bf16 %v1552, %v1536
        %v1716 = vpack.c.bf16 %v1553, %v1537
        %v1717 = vpack.c.bf16 %v1554, %v1538
        %v1718 = vpack.c.bf16 %v1555, %v1539
        %v1719 = vpack.c.bf16 %v1556, %v1540
        %v1720 = vpack.c.bf16 %v1557, %v1541
        %v1721 = vpack.c.bf16 %v1558, %v1542
        %v1722 = vpack.c.bf16 %v1559, %v1543
        %v1723 = vpack.c.bf16 %v1560, %v1544
        %v1724 = vpack.c.bf16 %v1561, %v1545
        %v1725 = vpack.c.bf16 %v1562, %v1546
        %v1726 = vpack.c.bf16 %v1563, %v1547
        %v1727 = vpack.c.bf16 %v1564, %v1548
        %v1728 = vpack.c.bf16 %v1565, %v1549
        %v1729 = vpack.c.bf16 %v1566, %v1550
        %v1730 = vpack.c.bf16 %v1583, %v1567
        %v1731 = vpack.c.bf16 %v1584, %v1568
        %v1732 = vpack.c.bf16 %v1585, %v1569
        %v1733 = vpack.c.bf16 %v1586, %v1570
        %v1734 = vpack.c.bf16 %v1587, %v1571
        %v1735 = vpack.c.bf16 %v1588, %v1572
        %v1736 = vpack.c.bf16 %v1589, %v1573
        %v1737 = vpack.c.bf16 %v1590, %v1574
        %v1738 = vpack.c.bf16 %v1591, %v1575
        %v1739 = vpack.c.bf16 %v1592, %v1576
        %v1740 = vpack.c.bf16 %v1593, %v1577
        %v1741 = vpack.c.bf16 %v1594, %v1578
        %v1742 = vpack.c.bf16 %v1595, %v1579
        %v1743 = vpack.c.bf16 %v1596, %v1580
        %v1744 = vpack.c.bf16 %v1597, %v1581
        %v1745 = vpack.c.bf16 %v1598, %v1582
        %1746 = vmatpush.bf16.msra.mxu0 %v1730
        %1747 = vmatpush.bf16.msra.mxu0 %v1714
        %1748 = vmatpush.bf16.msra.mxu0 %v1698
        %1749 = vmatpush.bf16.msra.mxu0 %v1682
        %1750 = vmatpush.bf16.msra.mxu0 %v1666
        %1751 = vmatpush.bf16.msra.mxu0 %v1650
        %1752 = vmatpush.bf16.msra.mxu0 %v1634
        %1753 = vmatpush.bf16.msra.mxu0 %v1618
        %1754 = vmatmul.bf16.gmra.mxu0 %v1613
        %v1755 = vpop.f32.mrf.mxu0
        %v1756 = vadd.f32 0.0, %v1755
        %v1757 = vpop.f32.mrf.mxu0
        %1758 = vdwg.mxu0
        %1759 = vmatpush.bf16.msra.mxu0 %v1731
        %1760 = vmatpush.bf16.msra.mxu0 %v1715
        %1761 = vmatpush.bf16.msra.mxu0 %v1699
        %1762 = vmatpush.bf16.msra.mxu0 %v1683
        %1763 = vmatpush.bf16.msra.mxu0 %v1667
        %1764 = vmatpush.bf16.msra.mxu0 %v1651
        %1765 = vmatpush.bf16.msra.mxu0 %v1635
        %1766 = vmatpush.bf16.msra.mxu0 %v1619
        %1767 = vmatmul.bf16.gmra.mxu0 %v1613
        %v1768 = vpop.f32.mrf.mxu0
        %v1769 = vadd.f32 0.0, %v1768
        %v1770 = vpop.f32.mrf.mxu0
        %1771 = vdwg.mxu0
        %1772 = vmatpush.bf16.msra.mxu0 %v1732
        %1773 = vmatpush.bf16.msra.mxu0 %v1716
        %1774 = vmatpush.bf16.msra.mxu0 %v1700
        %1775 = vmatpush.bf16.msra.mxu0 %v1684
        %1776 = vmatpush.bf16.msra.mxu0 %v1668
        %1777 = vmatpush.bf16.msra.mxu0 %v1652
        %1778 = vmatpush.bf16.msra.mxu0 %v1636
        %1779 = vmatpush.bf16.msra.mxu0 %v1620
        %1780 = vmatmul.bf16.gmra.mxu0 %v1613
        %v1781 = vpop.f32.mrf.mxu0
        %v1782 = vadd.f32 0.0, %v1781
        %v1783 = vpop.f32.mrf.mxu0
        %1784 = vdwg.mxu0
        %1785 = vmatpush.bf16.msra.mxu0 %v1733
        %1786 = vmatpush.bf16.msra.mxu0 %v1717
        %1787 = vmatpush.bf16.msra.mxu0 %v1701
        %1788 = vmatpush.bf16.msra.mxu0 %v1685
        %1789 = vmatpush.bf16.msra.mxu0 %v1669
        %1790 = vmatpush.bf16.msra.mxu0 %v1653
        %1791 = vmatpush.bf16.msra.mxu0 %v1637
        %1792 = vmatpush.bf16.msra.mxu0 %v1621
        %1793 = vmatmul.bf16.gmra.mxu0 %v1613
        %v1794 = vpop.f32.mrf.mxu0
        %v1795 = vadd.f32 0.0, %v1794
        %v1796 = vpop.f32.mrf.mxu0
        %1797 = vdwg.mxu0
        %1798 = vmatpush.bf16.msra.mxu0 %v1734
        %1799 = vmatpush.bf16.msra.mxu0 %v1718
        %1800 = vmatpush.bf16.msra.mxu0 %v1702
        %1801 = vmatpush.bf16.msra.mxu0 %v1686
        %1802 = vmatpush.bf16.msra.mxu0 %v1670
        %1803 = vmatpush.bf16.msra.mxu0 %v1654
        %1804 = vmatpush.bf16.msra.mxu0 %v1638
        %1805 = vmatpush.bf16.msra.mxu0 %v1622
        %1806 = vmatmul.bf16.gmra.mxu0 %v1613
        %v1807 = vpop.f32.mrf.mxu0
        %v1808 = vadd.f32 0.0, %v1807
        %v1809 = vpop.f32.mrf.mxu0
        %1810 = vdwg.mxu0
        %1811 = vmatpush.bf16.msra.mxu0 %v1735
        %1812 = vmatpush.bf16.msra.mxu0 %v1719
        %1813 = vmatpush.bf16.msra.mxu0 %v1703
        %1814 = vmatpush.bf16.msra.mxu0 %v1687
        %1815 = vmatpush.bf16.msra.mxu0 %v1671
        %1816 = vmatpush.bf16.msra.mxu0 %v1655
        %1817 = vmatpush.bf16.msra.mxu0 %v1639
        %1818 = vmatpush.bf16.msra.mxu0 %v1623
        %1819 = vmatmul.bf16.gmra.mxu0 %v1613
        %v1820 = vpop.f32.mrf.mxu0
        %v1821 = vadd.f32 0.0, %v1820
        %v1822 = vpop.f32.mrf.mxu0
        %1823 = vdwg.mxu0
        %1824 = vmatpush.bf16.msra.mxu0 %v1736
        %1825 = vmatpush.bf16.msra.mxu0 %v1720
        %1826 = vmatpush.bf16.msra.mxu0 %v1704
        %1827 = vmatpush.bf16.msra.mxu0 %v1688
        %1828 = vmatpush.bf16.msra.mxu0 %v1672
        %1829 = vmatpush.bf16.msra.mxu0 %v1656
        %1830 = vmatpush.bf16.msra.mxu0 %v1640
        %1831 = vmatpush.bf16.msra.mxu0 %v1624
        %1832 = vmatmul.bf16.gmra.mxu0 %v1613
        %v1833 = vpop.f32.mrf.mxu0
        %v1834 = vadd.f32 0.0, %v1833
        %v1835 = vpop.f32.mrf.mxu0
        %1836 = vdwg.mxu0
        %1837 = vmatpush.bf16.msra.mxu0 %v1737
        %1838 = vmatpush.bf16.msra.mxu0 %v1721
        %1839 = vmatpush.bf16.msra.mxu0 %v1705
        %1840 = vmatpush.bf16.msra.mxu0 %v1689
        %1841 = vmatpush.bf16.msra.mxu0 %v1673
        %1842 = vmatpush.bf16.msra.mxu0 %v1657
        %1843 = vmatpush.bf16.msra.mxu0 %v1641
        %1844 = vmatpush.bf16.msra.mxu0 %v1625
        %1845 = vmatmul.bf16.gmra.mxu0 %v1613
        %v1846 = vpop.f32.mrf.mxu0
        %v1847 = vadd.f32 0.0, %v1846
        %v1848 = vpop.f32.mrf.mxu0
        %1849 = vdwg.mxu0
        %1850 = vmatpush.bf16.msra.mxu0 %v1738
        %1851 = vmatpush.bf16.msra.mxu0 %v1722
        %1852 = vmatpush.bf16.msra.mxu0 %v1706
        %1853 = vmatpush.bf16.msra.mxu0 %v1690
        %1854 = vmatpush.bf16.msra.mxu0 %v1674
        %1855 = vmatpush.bf16.msra.mxu0 %v1658
        %1856 = vmatpush.bf16.msra.mxu0 %v1642
        %1857 = vmatpush.bf16.msra.mxu0 %v1626
        %1858 = vmatmul.bf16.gmra.mxu0 %v1613
        %v1859 = vpop.f32.mrf.mxu0
        %v1860 = vadd.f32 0.0, %v1859
        %v1861 = vpop.f32.mrf.mxu0
        %1862 = vdwg.mxu0
        %1863 = vmatpush.bf16.msra.mxu0 %v1739
        %1864 = vmatpush.bf16.msra.mxu0 %v1723
        %1865 = vmatpush.bf16.msra.mxu0 %v1707
        %1866 = vmatpush.bf16.msra.mxu0 %v1691
        %1867 = vmatpush.bf16.msra.mxu0 %v1675
        %1868 = vmatpush.bf16.msra.mxu0 %v1659
        %1869 = vmatpush.bf16.msra.mxu0 %v1643
        %1870 = vmatpush.bf16.msra.mxu0 %v1627
        %1871 = vmatmul.bf16.gmra.mxu0 %v1613
        %v1872 = vpop.f32.mrf.mxu0
        %v1873 = vadd.f32 0.0, %v1872
        %v1874 = vpop.f32.mrf.mxu0
        %1875 = vdwg.mxu0
        %1876 = vmatpush.bf16.msra.mxu0 %v1740
        %1877 = vmatpush.bf16.msra.mxu0 %v1724
        %1878 = vmatpush.bf16.msra.mxu0 %v1708
        %1879 = vmatpush.bf16.msra.mxu0 %v1692
        %1880 = vmatpush.bf16.msra.mxu0 %v1676
        %1881 = vmatpush.bf16.msra.mxu0 %v1660
        %1882 = vmatpush.bf16.msra.mxu0 %v1644
        %1883 = vmatpush.bf16.msra.mxu0 %v1628
        %1884 = vmatmul.bf16.gmra.mxu0 %v1613
        %v1885 = vpop.f32.mrf.mxu0
        %v1886 = vadd.f32 0.0, %v1885
        %v1887 = vpop.f32.mrf.mxu0
        %1888 = vdwg.mxu0
        %1889 = vmatpush.bf16.msra.mxu0 %v1741
        %1890 = vmatpush.bf16.msra.mxu0 %v1725
        %1891 = vmatpush.bf16.msra.mxu0 %v1709
        %1892 = vmatpush.bf16.msra.mxu0 %v1693
        %1893 = vmatpush.bf16.msra.mxu0 %v1677
        %1894 = vmatpush.bf16.msra.mxu0 %v1661
        %1895 = vmatpush.bf16.msra.mxu0 %v1645
        %1896 = vmatpush.bf16.msra.mxu0 %v1629
        %1897 = vmatmul.bf16.gmra.mxu0 %v1613
        %v1898 = vpop.f32.mrf.mxu0
        %v1899 = vadd.f32 0.0, %v1898
        %v1900 = vpop.f32.mrf.mxu0
        %1901 = vdwg.mxu0
        %1902 = vmatpush.bf16.msra.mxu0 %v1742
        %1903 = vmatpush.bf16.msra.mxu0 %v1726
        %1904 = vmatpush.bf16.msra.mxu0 %v1710
        %1905 = vmatpush.bf16.msra.mxu0 %v1694
        %1906 = vmatpush.bf16.msra.mxu0 %v1678
        %1907 = vmatpush.bf16.msra.mxu0 %v1662
        %1908 = vmatpush.bf16.msra.mxu0 %v1646
        %1909 = vmatpush.bf16.msra.mxu0 %v1630
        %1910 = vmatmul.bf16.gmra.mxu0 %v1613
        %v1911 = vpop.f32.mrf.mxu0
        %v1912 = vadd.f32 0.0, %v1911
        %v1913 = vpop.f32.mrf.mxu0
        %1914 = vdwg.mxu0
        %1915 = vmatpush.bf16.msra.mxu0 %v1743
        %1916 = vmatpush.bf16.msra.mxu0 %v1727
        %1917 = vmatpush.bf16.msra.mxu0 %v1711
        %1918 = vmatpush.bf16.msra.mxu0 %v1695
        %1919 = vmatpush.bf16.msra.mxu0 %v1679
        %1920 = vmatpush.bf16.msra.mxu0 %v1663
        %1921 = vmatpush.bf16.msra.mxu0 %v1647
        %1922 = vmatpush.bf16.msra.mxu0 %v1631
        %1923 = vmatmul.bf16.gmra.mxu0 %v1613
        %v1924 = vpop.f32.mrf.mxu0
        %v1925 = vadd.f32 0.0, %v1924
        %v1926 = vpop.f32.mrf.mxu0
        %1927 = vdwg.mxu0
        %1928 = vmatpush.bf16.msra.mxu0 %v1744
        %1929 = vmatpush.bf16.msra.mxu0 %v1728
        %1930 = vmatpush.bf16.msra.mxu0 %v1712
        %1931 = vmatpush.bf16.msra.mxu0 %v1696
        %1932 = vmatpush.bf16.msra.mxu0 %v1680
        %1933 = vmatpush.bf16.msra.mxu0 %v1664
        %1934 = vmatpush.bf16.msra.mxu0 %v1648
        %1935 = vmatpush.bf16.msra.mxu0 %v1632
        %1936 = vmatmul.bf16.gmra.mxu0 %v1613
        %v1937 = vpop.f32.mrf.mxu0
        %v1938 = vadd.f32 0.0, %v1937
        %v1939 = vpop.f32.mrf.mxu0
        %1940 = vdwg.mxu0
        %1941 = vmatpush.bf16.msra.mxu0 %v1745
        %1942 = vmatpush.bf16.msra.mxu0 %v1729
        %1943 = vmatpush.bf16.msra.mxu0 %v1713
        %1944 = vmatpush.bf16.msra.mxu0 %v1697
        %1945 = vmatpush.bf16.msra.mxu0 %v1681
        %1946 = vmatpush.bf16.msra.mxu0 %v1665
        %1947 = vmatpush.bf16.msra.mxu0 %v1649
        %1948 = vmatpush.bf16.msra.mxu0 %v1633
        %1949 = vmatmul.bf16.gmra.mxu0 %v1613
        %v1950 = vpop.f32.mrf.mxu0
        %v1951 = vadd.f32 0.0, %v1950
        %v1952 = vpop.f32.mrf.mxu0
        %1953 = vdwg.mxu0
        %v1970 = vrot.slane %v1769, 6
        %v1971 = vrot.slane %v1782, 4
        %v1972 = vrot.slane %v1795, 2
        %v1973 = vrot.slane %v1821, 6
        %v1974 = vrot.slane %v1834, 4
        %v1975 = vrot.slane %v1847, 2
        %v1976 = vrot.slane %v1873, 6
        %v1977 = vrot.slane %v1886, 4
        %v1978 = vrot.slane %v1899, 2
        %v1979 = vrot.slane %v1925, 6
        %v1980 = vrot.slane %v1938, 4
        %v1981 = vrot.slane %v1951, 2
        %vm1982 = vcmask 1041408
        %v1983 = vsel %vm1982, %v1756, %v1970
        %vm1984 = vcmask 1045508
        %v1985 = vsel %vm1984, %v1971, %v1972
        %vm1986 = vcmask 1043456
        %v1987 = vsel %vm1986, %v1983, %v1985
        %v1988 = vsel %vm1982, %v1808, %v1973
        %v1989 = vsel %vm1984, %v1974, %v1975
        %v1990 = vsel %vm1986, %v1988, %v1989
        %v1991 = vsel %vm1982, %v1860, %v1976
        %v1992 = vsel %vm1984, %v1977, %v1978
        %v1993 = vsel %vm1986, %v1991, %v1992
        %v1994 = vsel %vm1982, %v1912, %v1979
        %v1995 = vsel %vm1984, %v1980, %v1981
        %v1996 = vsel %vm1986, %v1994, %v1995
        %v2001 = vadd.f32 %v1614, %v1987
        %v2002 = vadd.f32 %v1615, %v1990
        %v2003 = vadd.f32 %v1616, %v1993
        %v2004 = vadd.f32 %v1617, %v1996
        %2005 = vst [vmem:[#allocation2] sm:$0xff] %v2001
        %2006 = vst [vmem:[#allocation2 + $0x8] sm:$0xff] %v2002
        %2007 = vst [vmem:[#allocation2 + $0x10] sm:$0xff] %v2003
        %2008 = vst [vmem:[#allocation2 + $0x18] sm:$0xff] %v2004
        %p2009 = scmp.eq.s32.totalorder %s16, 3
        // Predicated region
        $region86: #{backbone_nfc_id_forward.1} parent=76 // pred_check
          %p2010 = pneg %p2009
        $region87: #{backbone_nfc_id_forward.1} parent=76 // pred_check_branch
          %2012 = sbr.rel (%p2010) target = $region89
        $region88: #{backbone_nfc_id_forward.1} parent=76 // pred_region
          %v2013 = vld [vmem:[#allocation2] sm:$0xff]
          %v2014 = vld [vmem:[#allocation2 + $0x8] sm:$0xff]
          %v2015 = vld [vmem:[#allocation2 + $0x10] sm:$0xff]
          %v2016 = vld [vmem:[#allocation2 + $0x18] sm:$0xff]
          %v2017 = vmul.f32 %v2013, 0.00390625
          %v2018 = vmul.f32 %v2014, 0.00390625
          %v2019 = vmul.f32 %v2015, 0.00390625
          %v2020 = vmul.f32 %v2016, 0.00390625
          %v2021 = vld [vmem:[%s3] sm:$0xff]
          %v2022 = vld [vmem:[%s3 + $0x8] sm:$0xff]
          %v2023 = vld [vmem:[%s3 + $0x10] sm:$0xff]
          %v2024 = vld [vmem:[%s3 + $0x18] sm:$0xff]
          %v2025 = vld [vmem:[%s3 + $0x20] sm:$0xff]
          %v2026 = vld [vmem:[%s3 + $0x28] sm:$0xff]
          %v2027 = vld [vmem:[%s3 + $0x30] sm:$0xff]
          %v2028 = vld [vmem:[%s3 + $0x38] sm:$0xff]
          %v2029 = vld [vmem:[%s3 + $0x40] sm:$0xff]
          %v2030 = vld [vmem:[%s3 + $0x48] sm:$0xff]
          %v2031 = vld [vmem:[%s3 + $0x50] sm:$0xff]
          %v2032 = vld [vmem:[%s3 + $0x58] sm:$0xff]
          %v2033 = vld [vmem:[%s3 + $0x60] sm:$0xff]
          %v2034 = vld [vmem:[%s3 + $0x68] sm:$0xff]
          %v2035 = vld [vmem:[%s3 + $0x70] sm:$0xff]
          %v2036 = vld [vmem:[%s3 + $0x78] sm:$0xff]
          %v2037 = vld [vmem:[%s3 + $0x80] sm:$0xff]
          %v2038 = vld [vmem:[%s3 + $0x88] sm:$0xff]
          %v2039 = vld [vmem:[%s3 + $0x90] sm:$0xff]
          %v2040 = vld [vmem:[%s3 + $0x98] sm:$0xff]
          %v2041 = vld [vmem:[%s3 + $0xa0] sm:$0xff]
          %v2042 = vld [vmem:[%s3 + $0xa8] sm:$0xff]
          %v2043 = vld [vmem:[%s3 + $0xb0] sm:$0xff]
          %v2044 = vld [vmem:[%s3 + $0xb8] sm:$0xff]
          %v2045 = vld [vmem:[%s3 + $0xc0] sm:$0xff]
          %v2046 = vld [vmem:[%s3 + $0xc8] sm:$0xff]
          %v2047 = vld [vmem:[%s3 + $0xd0] sm:$0xff]
          %v2048 = vld [vmem:[%s3 + $0xd8] sm:$0xff]
          %v2049 = vld [vmem:[%s3 + $0xe0] sm:$0xff]
          %v2050 = vld [vmem:[%s3 + $0xe8] sm:$0xff]
          %v2051 = vld [vmem:[%s3 + $0xf0] sm:$0xff]
          %v2052 = vld [vmem:[%s3 + $0xf8] sm:$0xff]
          %v2053 = vld [vmem:[%s3 + $0x100] sm:$0xff]
          %v2054 = vld [vmem:[%s3 + $0x108] sm:$0xff]
          %v2055 = vld [vmem:[%s3 + $0x110] sm:$0xff]
          %v2056 = vld [vmem:[%s3 + $0x118] sm:$0xff]
          %v2057 = vld [vmem:[%s3 + $0x120] sm:$0xff]
          %v2058 = vld [vmem:[%s3 + $0x128] sm:$0xff]
          %v2059 = vld [vmem:[%s3 + $0x130] sm:$0xff]
          %v2060 = vld [vmem:[%s3 + $0x138] sm:$0xff]
          %v2061 = vld [vmem:[%s3 + $0x140] sm:$0xff]
          %v2062 = vld [vmem:[%s3 + $0x148] sm:$0xff]
          %v2063 = vld [vmem:[%s3 + $0x150] sm:$0xff]
          %v2064 = vld [vmem:[%s3 + $0x158] sm:$0xff]
          %v2065 = vld [vmem:[%s3 + $0x160] sm:$0xff]
          %v2066 = vld [vmem:[%s3 + $0x168] sm:$0xff]
          %v2067 = vld [vmem:[%s3 + $0x170] sm:$0xff]
          %v2068 = vld [vmem:[%s3 + $0x178] sm:$0xff]
          %v2069 = vld [vmem:[%s3 + $0x180] sm:$0xff]
          %v2070 = vld [vmem:[%s3 + $0x188] sm:$0xff]
          %v2071 = vld [vmem:[%s3 + $0x190] sm:$0xff]
          %v2072 = vld [vmem:[%s3 + $0x198] sm:$0xff]
          %v2073 = vld [vmem:[%s3 + $0x1a0] sm:$0xff]
          %v2074 = vld [vmem:[%s3 + $0x1a8] sm:$0xff]
          %v2075 = vld [vmem:[%s3 + $0x1b0] sm:$0xff]
          %v2076 = vld [vmem:[%s3 + $0x1b8] sm:$0xff]
          %v2077 = vld [vmem:[%s3 + $0x1c0] sm:$0xff]
          %v2078 = vld [vmem:[%s3 + $0x1c8] sm:$0xff]
          %v2079 = vld [vmem:[%s3 + $0x1d0] sm:$0xff]
          %v2080 = vld [vmem:[%s3 + $0x1d8] sm:$0xff]
          %v2081 = vld [vmem:[%s3 + $0x1e0] sm:$0xff]
          %v2082 = vld [vmem:[%s3 + $0x1e8] sm:$0xff]
          %v2083 = vld [vmem:[%s3 + $0x1f0] sm:$0xff]
          %v2084 = vld [vmem:[%s3 + $0x1f8] sm:$0xff]
          %v2085 = vld [vmem:[%s3 + $0x200] sm:$0xff]
          %v2086 = vld [vmem:[%s3 + $0x208] sm:$0xff]
          %v2087 = vld [vmem:[%s3 + $0x210] sm:$0xff]
          %v2088 = vld [vmem:[%s3 + $0x218] sm:$0xff]
          %v2089 = vld [vmem:[%s3 + $0x220] sm:$0xff]
          %v2090 = vld [vmem:[%s3 + $0x228] sm:$0xff]
          %v2091 = vld [vmem:[%s3 + $0x230] sm:$0xff]
          %v2092 = vld [vmem:[%s3 + $0x238] sm:$0xff]
          %v2093 = vld [vmem:[%s3 + $0x240] sm:$0xff]
          %v2094 = vld [vmem:[%s3 + $0x248] sm:$0xff]
          %v2095 = vld [vmem:[%s3 + $0x250] sm:$0xff]
          %v2096 = vld [vmem:[%s3 + $0x258] sm:$0xff]
          %v2097 = vld [vmem:[%s3 + $0x260] sm:$0xff]
          %v2098 = vld [vmem:[%s3 + $0x268] sm:$0xff]
          %v2099 = vld [vmem:[%s3 + $0x270] sm:$0xff]
          %v2100 = vld [vmem:[%s3 + $0x278] sm:$0xff]
          %v2101 = vld [vmem:[%s3 + $0x280] sm:$0xff]
          %v2102 = vld [vmem:[%s3 + $0x288] sm:$0xff]
          %v2103 = vld [vmem:[%s3 + $0x290] sm:$0xff]
          %v2104 = vld [vmem:[%s3 + $0x298] sm:$0xff]
          %v2105 = vld [vmem:[%s3 + $0x2a0] sm:$0xff]
          %v2106 = vld [vmem:[%s3 + $0x2a8] sm:$0xff]
          %v2107 = vld [vmem:[%s3 + $0x2b0] sm:$0xff]
          %v2108 = vld [vmem:[%s3 + $0x2b8] sm:$0xff]
          %v2109 = vld [vmem:[%s3 + $0x2c0] sm:$0xff]
          %v2110 = vld [vmem:[%s3 + $0x2c8] sm:$0xff]
          %v2111 = vld [vmem:[%s3 + $0x2d0] sm:$0xff]
          %v2112 = vld [vmem:[%s3 + $0x2d8] sm:$0xff]
          %v2113 = vld [vmem:[%s3 + $0x2e0] sm:$0xff]
          %v2114 = vld [vmem:[%s3 + $0x2e8] sm:$0xff]
          %v2115 = vld [vmem:[%s3 + $0x2f0] sm:$0xff]
          %v2116 = vld [vmem:[%s3 + $0x2f8] sm:$0xff]
          %v2117 = vld [vmem:[%s3 + $0x300] sm:$0xff]
          %v2118 = vld [vmem:[%s3 + $0x308] sm:$0xff]
          %v2119 = vld [vmem:[%s3 + $0x310] sm:$0xff]
          %v2120 = vld [vmem:[%s3 + $0x318] sm:$0xff]
          %v2121 = vld [vmem:[%s3 + $0x320] sm:$0xff]
          %v2122 = vld [vmem:[%s3 + $0x328] sm:$0xff]
          %v2123 = vld [vmem:[%s3 + $0x330] sm:$0xff]
          %v2124 = vld [vmem:[%s3 + $0x338] sm:$0xff]
          %v2125 = vld [vmem:[%s3 + $0x340] sm:$0xff]
          %v2126 = vld [vmem:[%s3 + $0x348] sm:$0xff]
          %v2127 = vld [vmem:[%s3 + $0x350] sm:$0xff]
          %v2128 = vld [vmem:[%s3 + $0x358] sm:$0xff]
          %v2129 = vld [vmem:[%s3 + $0x360] sm:$0xff]
          %v2130 = vld [vmem:[%s3 + $0x368] sm:$0xff]
          %v2131 = vld [vmem:[%s3 + $0x370] sm:$0xff]
          %v2132 = vld [vmem:[%s3 + $0x378] sm:$0xff]
          %v2133 = vld [vmem:[%s3 + $0x380] sm:$0xff]
          %v2134 = vld [vmem:[%s3 + $0x388] sm:$0xff]
          %v2135 = vld [vmem:[%s3 + $0x390] sm:$0xff]
          %v2136 = vld [vmem:[%s3 + $0x398] sm:$0xff]
          %v2137 = vld [vmem:[%s3 + $0x3a0] sm:$0xff]
          %v2138 = vld [vmem:[%s3 + $0x3a8] sm:$0xff]
          %v2139 = vld [vmem:[%s3 + $0x3b0] sm:$0xff]
          %v2140 = vld [vmem:[%s3 + $0x3b8] sm:$0xff]
          %v2141 = vld [vmem:[%s3 + $0x3c0] sm:$0xff]
          %v2142 = vld [vmem:[%s3 + $0x3c8] sm:$0xff]
          %v2143 = vld [vmem:[%s3 + $0x3d0] sm:$0xff]
          %v2144 = vld [vmem:[%s3 + $0x3d8] sm:$0xff]
          %v2145 = vld [vmem:[%s3 + $0x3e0] sm:$0xff]
          %v2146 = vld [vmem:[%s3 + $0x3e8] sm:$0xff]
          %v2147 = vld [vmem:[%s3 + $0x3f0] sm:$0xff]
          %v2148 = vld [vmem:[%s3 + $0x3f8] sm:$0xff]
          %v2149 = vld [vmem:[%s3 + $0x400] sm:$0xff]
          %v2150 = vld [vmem:[%s3 + $0x408] sm:$0xff]
          %v2151 = vld [vmem:[%s3 + $0x410] sm:$0xff]
          %v2152 = vld [vmem:[%s3 + $0x418] sm:$0xff]
          %v2153 = vld [vmem:[%s3 + $0x420] sm:$0xff]
          %v2154 = vld [vmem:[%s3 + $0x428] sm:$0xff]
          %v2155 = vld [vmem:[%s3 + $0x430] sm:$0xff]
          %v2156 = vld [vmem:[%s3 + $0x438] sm:$0xff]
          %v2157 = vld [vmem:[%s3 + $0x440] sm:$0xff]
          %v2158 = vld [vmem:[%s3 + $0x448] sm:$0xff]
          %v2159 = vld [vmem:[%s3 + $0x450] sm:$0xff]
          %v2160 = vld [vmem:[%s3 + $0x458] sm:$0xff]
          %v2161 = vld [vmem:[%s3 + $0x460] sm:$0xff]
          %v2162 = vld [vmem:[%s3 + $0x468] sm:$0xff]
          %v2163 = vld [vmem:[%s3 + $0x470] sm:$0xff]
          %v2164 = vld [vmem:[%s3 + $0x478] sm:$0xff]
          %v2165 = vld [vmem:[%s3 + $0x480] sm:$0xff]
          %v2166 = vld [vmem:[%s3 + $0x488] sm:$0xff]
          %v2167 = vld [vmem:[%s3 + $0x490] sm:$0xff]
          %v2168 = vld [vmem:[%s3 + $0x498] sm:$0xff]
          %v2169 = vld [vmem:[%s3 + $0x4a0] sm:$0xff]
          %v2170 = vld [vmem:[%s3 + $0x4a8] sm:$0xff]
          %v2171 = vld [vmem:[%s3 + $0x4b0] sm:$0xff]
          %v2172 = vld [vmem:[%s3 + $0x4b8] sm:$0xff]
          %v2173 = vld [vmem:[%s3 + $0x4c0] sm:$0xff]
          %v2174 = vld [vmem:[%s3 + $0x4c8] sm:$0xff]
          %v2175 = vld [vmem:[%s3 + $0x4d0] sm:$0xff]
          %v2176 = vld [vmem:[%s3 + $0x4d8] sm:$0xff]
          %v2177 = vld [vmem:[%s3 + $0x4e0] sm:$0xff]
          %v2178 = vld [vmem:[%s3 + $0x4e8] sm:$0xff]
          %v2179 = vld [vmem:[%s3 + $0x4f0] sm:$0xff]
          %v2180 = vld [vmem:[%s3 + $0x4f8] sm:$0xff]
          %v2181 = vld [vmem:[%s3 + $0x500] sm:$0xff]
          %v2182 = vld [vmem:[%s3 + $0x508] sm:$0xff]
          %v2183 = vld [vmem:[%s3 + $0x510] sm:$0xff]
          %v2184 = vld [vmem:[%s3 + $0x518] sm:$0xff]
          %v2185 = vld [vmem:[%s3 + $0x520] sm:$0xff]
          %v2186 = vld [vmem:[%s3 + $0x528] sm:$0xff]
          %v2187 = vld [vmem:[%s3 + $0x530] sm:$0xff]
          %v2188 = vld [vmem:[%s3 + $0x538] sm:$0xff]
          %v2189 = vld [vmem:[%s3 + $0x540] sm:$0xff]
          %v2190 = vld [vmem:[%s3 + $0x548] sm:$0xff]
          %v2191 = vld [vmem:[%s3 + $0x550] sm:$0xff]
          %v2192 = vld [vmem:[%s3 + $0x558] sm:$0xff]
          %v2193 = vld [vmem:[%s3 + $0x560] sm:$0xff]
          %v2194 = vld [vmem:[%s3 + $0x568] sm:$0xff]
          %v2195 = vld [vmem:[%s3 + $0x570] sm:$0xff]
          %v2196 = vld [vmem:[%s3 + $0x578] sm:$0xff]
          %v2197 = vld [vmem:[%s3 + $0x580] sm:$0xff]
          %v2198 = vld [vmem:[%s3 + $0x588] sm:$0xff]
          %v2199 = vld [vmem:[%s3 + $0x590] sm:$0xff]
          %v2200 = vld [vmem:[%s3 + $0x598] sm:$0xff]
          %v2201 = vld [vmem:[%s3 + $0x5a0] sm:$0xff]
          %v2202 = vld [vmem:[%s3 + $0x5a8] sm:$0xff]
          %v2203 = vld [vmem:[%s3 + $0x5b0] sm:$0xff]
          %v2204 = vld [vmem:[%s3 + $0x5b8] sm:$0xff]
          %v2205 = vld [vmem:[%s3 + $0x5c0] sm:$0xff]
          %v2206 = vld [vmem:[%s3 + $0x5c8] sm:$0xff]
          %v2207 = vld [vmem:[%s3 + $0x5d0] sm:$0xff]
          %v2208 = vld [vmem:[%s3 + $0x5d8] sm:$0xff]
          %v2209 = vld [vmem:[%s3 + $0x5e0] sm:$0xff]
          %v2210 = vld [vmem:[%s3 + $0x5e8] sm:$0xff]
          %v2211 = vld [vmem:[%s3 + $0x5f0] sm:$0xff]
          %v2212 = vld [vmem:[%s3 + $0x5f8] sm:$0xff]
          %v2213 = vld [vmem:[%s3 + $0x600] sm:$0xff]
          %v2214 = vld [vmem:[%s3 + $0x608] sm:$0xff]
          %v2215 = vld [vmem:[%s3 + $0x610] sm:$0xff]
          %v2216 = vld [vmem:[%s3 + $0x618] sm:$0xff]
          %v2217 = vld [vmem:[%s3 + $0x620] sm:$0xff]
          %v2218 = vld [vmem:[%s3 + $0x628] sm:$0xff]
          %v2219 = vld [vmem:[%s3 + $0x630] sm:$0xff]
          %v2220 = vld [vmem:[%s3 + $0x638] sm:$0xff]
          %v2221 = vld [vmem:[%s3 + $0x640] sm:$0xff]
          %v2222 = vld [vmem:[%s3 + $0x648] sm:$0xff]
          %v2223 = vld [vmem:[%s3 + $0x650] sm:$0xff]
          %v2224 = vld [vmem:[%s3 + $0x658] sm:$0xff]
          %v2225 = vld [vmem:[%s3 + $0x660] sm:$0xff]
          %v2226 = vld [vmem:[%s3 + $0x668] sm:$0xff]
          %v2227 = vld [vmem:[%s3 + $0x670] sm:$0xff]
          %v2228 = vld [vmem:[%s3 + $0x678] sm:$0xff]
          %v2229 = vld [vmem:[%s3 + $0x680] sm:$0xff]
          %v2230 = vld [vmem:[%s3 + $0x688] sm:$0xff]
          %v2231 = vld [vmem:[%s3 + $0x690] sm:$0xff]
          %v2232 = vld [vmem:[%s3 + $0x698] sm:$0xff]
          %v2233 = vld [vmem:[%s3 + $0x6a0] sm:$0xff]
          %v2234 = vld [vmem:[%s3 + $0x6a8] sm:$0xff]
          %v2235 = vld [vmem:[%s3 + $0x6b0] sm:$0xff]
          %v2236 = vld [vmem:[%s3 + $0x6b8] sm:$0xff]
          %v2237 = vld [vmem:[%s3 + $0x6c0] sm:$0xff]
          %v2238 = vld [vmem:[%s3 + $0x6c8] sm:$0xff]
          %v2239 = vld [vmem:[%s3 + $0x6d0] sm:$0xff]
          %v2240 = vld [vmem:[%s3 + $0x6d8] sm:$0xff]
          %v2241 = vld [vmem:[%s3 + $0x6e0] sm:$0xff]
          %v2242 = vld [vmem:[%s3 + $0x6e8] sm:$0xff]
          %v2243 = vld [vmem:[%s3 + $0x6f0] sm:$0xff]
          %v2244 = vld [vmem:[%s3 + $0x6f8] sm:$0xff]
          %v2245 = vld [vmem:[%s3 + $0x700] sm:$0xff]
          %v2246 = vld [vmem:[%s3 + $0x708] sm:$0xff]
          %v2247 = vld [vmem:[%s3 + $0x710] sm:$0xff]
          %v2248 = vld [vmem:[%s3 + $0x718] sm:$0xff]
          %v2249 = vld [vmem:[%s3 + $0x720] sm:$0xff]
          %v2250 = vld [vmem:[%s3 + $0x728] sm:$0xff]
          %v2251 = vld [vmem:[%s3 + $0x730] sm:$0xff]
          %v2252 = vld [vmem:[%s3 + $0x738] sm:$0xff]
          %v2253 = vld [vmem:[%s3 + $0x740] sm:$0xff]
          %v2254 = vld [vmem:[%s3 + $0x748] sm:$0xff]
          %v2255 = vld [vmem:[%s3 + $0x750] sm:$0xff]
          %v2256 = vld [vmem:[%s3 + $0x758] sm:$0xff]
          %v2257 = vld [vmem:[%s3 + $0x760] sm:$0xff]
          %v2258 = vld [vmem:[%s3 + $0x768] sm:$0xff]
          %v2259 = vld [vmem:[%s3 + $0x770] sm:$0xff]
          %v2260 = vld [vmem:[%s3 + $0x778] sm:$0xff]
          %v2261 = vld [vmem:[%s3 + $0x780] sm:$0xff]
          %v2262 = vld [vmem:[%s3 + $0x788] sm:$0xff]
          %v2263 = vld [vmem:[%s3 + $0x790] sm:$0xff]
          %v2264 = vld [vmem:[%s3 + $0x798] sm:$0xff]
          %v2265 = vld [vmem:[%s3 + $0x7a0] sm:$0xff]
          %v2266 = vld [vmem:[%s3 + $0x7a8] sm:$0xff]
          %v2267 = vld [vmem:[%s3 + $0x7b0] sm:$0xff]
          %v2268 = vld [vmem:[%s3 + $0x7b8] sm:$0xff]
          %v2269 = vld [vmem:[%s3 + $0x7c0] sm:$0xff]
          %v2270 = vld [vmem:[%s3 + $0x7c8] sm:$0xff]
          %v2271 = vld [vmem:[%s3 + $0x7d0] sm:$0xff]
          %v2272 = vld [vmem:[%s3 + $0x7d8] sm:$0xff]
          %v2273 = vld [vmem:[%s3 + $0x7e0] sm:$0xff]
          %v2274 = vld [vmem:[%s3 + $0x7e8] sm:$0xff]
          %v2275 = vld [vmem:[%s3 + $0x7f0] sm:$0xff]
          %v2276 = vld [vmem:[%s3 + $0x7f8] sm:$0xff]
          %v2277 = vld [vmem:[%s4] sm:$0x1]
          %v2279 = vperm.slane %v2277, 0
          %2285 = vst [vmem:[#allocation1] ss:$4 sm:$0xff] %v2017
          %s2286 = scalar_lea.vmem [#allocation1], 32
          %2287 = vst [vmem:[%s2286] ss:$4 sm:$0xff] %v2018
          %v2288 = vld.sshfl [vmem:[#allocation1] sm:$0xff pattern:$0x73625140]
          %v2289 = vld.sshfl [vmem:[#allocation1 + $0x8] sm:$0xff pattern:$0x73625140]
          %v2290 = vld.sshfl [vmem:[#allocation1 + $0x10] sm:$0xff pattern:$0x73625140]
          %v2291 = vld.sshfl [vmem:[#allocation1 + $0x18] sm:$0xff pattern:$0x73625140]
          %v2292 = vld.sshfl [vmem:[#allocation1 + $0x20] sm:$0xff pattern:$0x73625140]
          %v2293 = vld.sshfl [vmem:[#allocation1 + $0x28] sm:$0xff pattern:$0x73625140]
          %v2294 = vld.sshfl [vmem:[#allocation1 + $0x30] sm:$0xff pattern:$0x73625140]
          %v2295 = vld.sshfl [vmem:[#allocation1 + $0x38] sm:$0xff pattern:$0x73625140]
          %2296 = vst [vmem:[#allocation1] ss:$4 sm:$0xff] %v2019
          %2297 = vst [vmem:[%s2286] ss:$4 sm:$0xff] %v2020
          %v2298 = vld.sshfl [vmem:[#allocation1] sm:$0xff pattern:$0x73625140]
          %v2299 = vld.sshfl [vmem:[#allocation1 + $0x8] sm:$0xff pattern:$0x73625140]
          %v2300 = vld.sshfl [vmem:[#allocation1 + $0x10] sm:$0xff pattern:$0x73625140]
          %v2301 = vld.sshfl [vmem:[#allocation1 + $0x18] sm:$0xff pattern:$0x73625140]
          %v2302 = vld.sshfl [vmem:[#allocation1 + $0x20] sm:$0xff pattern:$0x73625140]
          %v2303 = vld.sshfl [vmem:[#allocation1 + $0x28] sm:$0xff pattern:$0x73625140]
          %v2304 = vld.sshfl [vmem:[#allocation1 + $0x30] sm:$0xff pattern:$0x73625140]
          %v2305 = vld.sshfl [vmem:[#allocation1 + $0x38] sm:$0xff pattern:$0x73625140]
          %2322 = vmatpush.msra.mxu0 %v2036
          %2323 = vmatpush.msra.mxu0 %v2035
          %2324 = vmatpush.msra.mxu0 %v2034
          %2325 = vmatpush.msra.mxu0 %v2033
          %2326 = vmatpush.msra.mxu0 %v2032
          %2327 = vmatpush.msra.mxu0 %v2031
          %2328 = vmatpush.msra.mxu0 %v2030
          %2329 = vmatpush.msra.mxu0 %v2029
          %2330 = vmatpush.msra.mxu0 %v2028
          %2331 = vmatpush.msra.mxu0 %v2027
          %2332 = vmatpush.msra.mxu0 %v2026
          %2333 = vmatpush.msra.mxu0 %v2025
          %2334 = vmatpush.msra.mxu0 %v2024
          %2335 = vmatpush.msra.mxu0 %v2023
          %2336 = vmatpush.msra.mxu0 %v2022
          %2337 = vmatpush.msra.mxu0 %v2021
          %2338 = vmatmul.f32.gmra.mxu0 %v2288
          %v2339 = vpop.f32.mrf.mxu0
          %v2340 = vadd.f32 %v2279, %v2339
          %2341 = vdwg.mxu0
          %2342 = vmatpush.msra.mxu0 %v2052
          %2343 = vmatpush.msra.mxu0 %v2051
          %2344 = vmatpush.msra.mxu0 %v2050
          %2345 = vmatpush.msra.mxu0 %v2049
          %2346 = vmatpush.msra.mxu0 %v2048
          %2347 = vmatpush.msra.mxu0 %v2047
          %2348 = vmatpush.msra.mxu0 %v2046
          %2349 = vmatpush.msra.mxu0 %v2045
          %2350 = vmatpush.msra.mxu0 %v2044
          %2351 = vmatpush.msra.mxu0 %v2043
          %2352 = vmatpush.msra.mxu0 %v2042
          %2353 = vmatpush.msra.mxu0 %v2041
          %2354 = vmatpush.msra.mxu0 %v2040
          %2355 = vmatpush.msra.mxu0 %v2039
          %2356 = vmatpush.msra.mxu0 %v2038
          %2357 = vmatpush.msra.mxu0 %v2037
          %2358 = vmatmul.f32.gmra.mxu0 %v2289
          %v2359 = vpop.f32.mrf.mxu0
          %v2360 = vadd.f32 %v2340, %v2359
          %2361 = vdwg.mxu0
          %2362 = vmatpush.msra.mxu0 %v2068
          %2363 = vmatpush.msra.mxu0 %v2067
          %2364 = vmatpush.msra.mxu0 %v2066
          %2365 = vmatpush.msra.mxu0 %v2065
          %2366 = vmatpush.msra.mxu0 %v2064
          %2367 = vmatpush.msra.mxu0 %v2063
          %2368 = vmatpush.msra.mxu0 %v2062
          %2369 = vmatpush.msra.mxu0 %v2061
          %2370 = vmatpush.msra.mxu0 %v2060
          %2371 = vmatpush.msra.mxu0 %v2059
          %2372 = vmatpush.msra.mxu0 %v2058
          %2373 = vmatpush.msra.mxu0 %v2057
          %2374 = vmatpush.msra.mxu0 %v2056
          %2375 = vmatpush.msra.mxu0 %v2055
          %2376 = vmatpush.msra.mxu0 %v2054
          %2377 = vmatpush.msra.mxu0 %v2053
          %2378 = vmatmul.f32.gmra.mxu0 %v2290
          %v2379 = vpop.f32.mrf.mxu0
          %v2380 = vadd.f32 %v2360, %v2379
          %2381 = vdwg.mxu0
          %2382 = vmatpush.msra.mxu0 %v2084
          %2383 = vmatpush.msra.mxu0 %v2083
          %2384 = vmatpush.msra.mxu0 %v2082
          %2385 = vmatpush.msra.mxu0 %v2081
          %2386 = vmatpush.msra.mxu0 %v2080
          %2387 = vmatpush.msra.mxu0 %v2079
          %2388 = vmatpush.msra.mxu0 %v2078
          %2389 = vmatpush.msra.mxu0 %v2077
          %2390 = vmatpush.msra.mxu0 %v2076
          %2391 = vmatpush.msra.mxu0 %v2075
          %2392 = vmatpush.msra.mxu0 %v2074
          %2393 = vmatpush.msra.mxu0 %v2073
          %2394 = vmatpush.msra.mxu0 %v2072
          %2395 = vmatpush.msra.mxu0 %v2071
          %2396 = vmatpush.msra.mxu0 %v2070
          %2397 = vmatpush.msra.mxu0 %v2069
          %2398 = vmatmul.f32.gmra.mxu0 %v2291
          %v2399 = vpop.f32.mrf.mxu0
          %v2400 = vadd.f32 %v2380, %v2399
          %2401 = vdwg.mxu0
          %2402 = vmatpush.msra.mxu0 %v2100
          %2403 = vmatpush.msra.mxu0 %v2099
          %2404 = vmatpush.msra.mxu0 %v2098
          %2405 = vmatpush.msra.mxu0 %v2097
          %2406 = vmatpush.msra.mxu0 %v2096
          %2407 = vmatpush.msra.mxu0 %v2095
          %2408 = vmatpush.msra.mxu0 %v2094
          %2409 = vmatpush.msra.mxu0 %v2093
          %2410 = vmatpush.msra.mxu0 %v2092
          %2411 = vmatpush.msra.mxu0 %v2091
          %2412 = vmatpush.msra.mxu0 %v2090
          %2413 = vmatpush.msra.mxu0 %v2089
          %2414 = vmatpush.msra.mxu0 %v2088
          %2415 = vmatpush.msra.mxu0 %v2087
          %2416 = vmatpush.msra.mxu0 %v2086
          %2417 = vmatpush.msra.mxu0 %v2085
          %2418 = vmatmul.f32.gmra.mxu0 %v2292
          %v2419 = vpop.f32.mrf.mxu0
          %v2420 = vadd.f32 %v2400, %v2419
          %2421 = vdwg.mxu0
          %2422 = vmatpush.msra.mxu0 %v2116
          %2423 = vmatpush.msra.mxu0 %v2115
          %2424 = vmatpush.msra.mxu0 %v2114
          %2425 = vmatpush.msra.mxu0 %v2113
          %2426 = vmatpush.msra.mxu0 %v2112
          %2427 = vmatpush.msra.mxu0 %v2111
          %2428 = vmatpush.msra.mxu0 %v2110
          %2429 = vmatpush.msra.mxu0 %v2109
          %2430 = vmatpush.msra.mxu0 %v2108
          %2431 = vmatpush.msra.mxu0 %v2107
          %2432 = vmatpush.msra.mxu0 %v2106
          %2433 = vmatpush.msra.mxu0 %v2105
          %2434 = vmatpush.msra.mxu0 %v2104
          %2435 = vmatpush.msra.mxu0 %v2103
          %2436 = vmatpush.msra.mxu0 %v2102
          %2437 = vmatpush.msra.mxu0 %v2101
          %2438 = vmatmul.f32.gmra.mxu0 %v2293
          %v2439 = vpop.f32.mrf.mxu0
          %v2440 = vadd.f32 %v2420, %v2439
          %2441 = vdwg.mxu0
          %2442 = vmatpush.msra.mxu0 %v2132
          %2443 = vmatpush.msra.mxu0 %v2131
          %2444 = vmatpush.msra.mxu0 %v2130
          %2445 = vmatpush.msra.mxu0 %v2129
          %2446 = vmatpush.msra.mxu0 %v2128
          %2447 = vmatpush.msra.mxu0 %v2127
          %2448 = vmatpush.msra.mxu0 %v2126
          %2449 = vmatpush.msra.mxu0 %v2125
          %2450 = vmatpush.msra.mxu0 %v2124
          %2451 = vmatpush.msra.mxu0 %v2123
          %2452 = vmatpush.msra.mxu0 %v2122
          %2453 = vmatpush.msra.mxu0 %v2121
          %2454 = vmatpush.msra.mxu0 %v2120
          %2455 = vmatpush.msra.mxu0 %v2119
          %2456 = vmatpush.msra.mxu0 %v2118
          %2457 = vmatpush.msra.mxu0 %v2117
          %2458 = vmatmul.f32.gmra.mxu0 %v2294
          %v2459 = vpop.f32.mrf.mxu0
          %v2460 = vadd.f32 %v2440, %v2459
          %2461 = vdwg.mxu0
          %2462 = vmatpush.msra.mxu0 %v2148
          %2463 = vmatpush.msra.mxu0 %v2147
          %2464 = vmatpush.msra.mxu0 %v2146
          %2465 = vmatpush.msra.mxu0 %v2145
          %2466 = vmatpush.msra.mxu0 %v2144
          %2467 = vmatpush.msra.mxu0 %v2143
          %2468 = vmatpush.msra.mxu0 %v2142
          %2469 = vmatpush.msra.mxu0 %v2141
          %2470 = vmatpush.msra.mxu0 %v2140
          %2471 = vmatpush.msra.mxu0 %v2139
          %2472 = vmatpush.msra.mxu0 %v2138
          %2473 = vmatpush.msra.mxu0 %v2137
          %2474 = vmatpush.msra.mxu0 %v2136
          %2475 = vmatpush.msra.mxu0 %v2135
          %2476 = vmatpush.msra.mxu0 %v2134
          %2477 = vmatpush.msra.mxu0 %v2133
          %2478 = vmatmul.f32.gmra.mxu0 %v2295
          %v2479 = vpop.f32.mrf.mxu0
          %v2480 = vadd.f32 %v2460, %v2479
          %2481 = vdwg.mxu0
          %2482 = vmatpush.msra.mxu0 %v2164
          %2483 = vmatpush.msra.mxu0 %v2163
          %2484 = vmatpush.msra.mxu0 %v2162
          %2485 = vmatpush.msra.mxu0 %v2161
          %2486 = vmatpush.msra.mxu0 %v2160
          %2487 = vmatpush.msra.mxu0 %v2159
          %2488 = vmatpush.msra.mxu0 %v2158
          %2489 = vmatpush.msra.mxu0 %v2157
          %2490 = vmatpush.msra.mxu0 %v2156
          %2491 = vmatpush.msra.mxu0 %v2155
          %2492 = vmatpush.msra.mxu0 %v2154
          %2493 = vmatpush.msra.mxu0 %v2153
          %2494 = vmatpush.msra.mxu0 %v2152
          %2495 = vmatpush.msra.mxu0 %v2151
          %2496 = vmatpush.msra.mxu0 %v2150
          %2497 = vmatpush.msra.mxu0 %v2149
          %2498 = vmatmul.f32.gmra.mxu0 %v2298
          %v2499 = vpop.f32.mrf.mxu0
          %v2500 = vadd.f32 %v2480, %v2499
          %2501 = vdwg.mxu0
          %2502 = vmatpush.msra.mxu0 %v2180
          %2503 = vmatpush.msra.mxu0 %v2179
          %2504 = vmatpush.msra.mxu0 %v2178
          %2505 = vmatpush.msra.mxu0 %v2177
          %2506 = vmatpush.msra.mxu0 %v2176
          %2507 = vmatpush.msra.mxu0 %v2175
          %2508 = vmatpush.msra.mxu0 %v2174
          %2509 = vmatpush.msra.mxu0 %v2173
          %2510 = vmatpush.msra.mxu0 %v2172
          %2511 = vmatpush.msra.mxu0 %v2171
          %2512 = vmatpush.msra.mxu0 %v2170
          %2513 = vmatpush.msra.mxu0 %v2169
          %2514 = vmatpush.msra.mxu0 %v2168
          %2515 = vmatpush.msra.mxu0 %v2167
          %2516 = vmatpush.msra.mxu0 %v2166
          %2517 = vmatpush.msra.mxu0 %v2165
          %2518 = vmatmul.f32.gmra.mxu0 %v2299
          %v2519 = vpop.f32.mrf.mxu0
          %v2520 = vadd.f32 %v2500, %v2519
          %2521 = vdwg.mxu0
          %2522 = vmatpush.msra.mxu0 %v2196
          %2523 = vmatpush.msra.mxu0 %v2195
          %2524 = vmatpush.msra.mxu0 %v2194
          %2525 = vmatpush.msra.mxu0 %v2193
          %2526 = vmatpush.msra.mxu0 %v2192
          %2527 = vmatpush.msra.mxu0 %v2191
          %2528 = vmatpush.msra.mxu0 %v2190
          %2529 = vmatpush.msra.mxu0 %v2189
          %2530 = vmatpush.msra.mxu0 %v2188
          %2531 = vmatpush.msra.mxu0 %v2187
          %2532 = vmatpush.msra.mxu0 %v2186
          %2533 = vmatpush.msra.mxu0 %v2185
          %2534 = vmatpush.msra.mxu0 %v2184
          %2535 = vmatpush.msra.mxu0 %v2183
          %2536 = vmatpush.msra.mxu0 %v2182
          %2537 = vmatpush.msra.mxu0 %v2181
          %2538 = vmatmul.f32.gmra.mxu0 %v2300
          %v2539 = vpop.f32.mrf.mxu0
          %v2540 = vadd.f32 %v2520, %v2539
          %2541 = vdwg.mxu0
          %2542 = vmatpush.msra.mxu0 %v2212
          %2543 = vmatpush.msra.mxu0 %v2211
          %2544 = vmatpush.msra.mxu0 %v2210
          %2545 = vmatpush.msra.mxu0 %v2209
          %2546 = vmatpush.msra.mxu0 %v2208
          %2547 = vmatpush.msra.mxu0 %v2207
          %2548 = vmatpush.msra.mxu0 %v2206
          %2549 = vmatpush.msra.mxu0 %v2205
          %2550 = vmatpush.msra.mxu0 %v2204
          %2551 = vmatpush.msra.mxu0 %v2203
          %2552 = vmatpush.msra.mxu0 %v2202
          %2553 = vmatpush.msra.mxu0 %v2201
          %2554 = vmatpush.msra.mxu0 %v2200
          %2555 = vmatpush.msra.mxu0 %v2199
          %2556 = vmatpush.msra.mxu0 %v2198
          %2557 = vmatpush.msra.mxu0 %v2197
          %2558 = vmatmul.f32.gmra.mxu0 %v2301
          %v2559 = vpop.f32.mrf.mxu0
          %v2560 = vadd.f32 %v2540, %v2559
          %2561 = vdwg.mxu0
          %2562 = vmatpush.msra.mxu0 %v2228
          %2563 = vmatpush.msra.mxu0 %v2227
          %2564 = vmatpush.msra.mxu0 %v2226
          %2565 = vmatpush.msra.mxu0 %v2225
          %2566 = vmatpush.msra.mxu0 %v2224
          %2567 = vmatpush.msra.mxu0 %v2223
          %2568 = vmatpush.msra.mxu0 %v2222
          %2569 = vmatpush.msra.mxu0 %v2221
          %2570 = vmatpush.msra.mxu0 %v2220
          %2571 = vmatpush.msra.mxu0 %v2219
          %2572 = vmatpush.msra.mxu0 %v2218
          %2573 = vmatpush.msra.mxu0 %v2217
          %2574 = vmatpush.msra.mxu0 %v2216
          %2575 = vmatpush.msra.mxu0 %v2215
          %2576 = vmatpush.msra.mxu0 %v2214
          %2577 = vmatpush.msra.mxu0 %v2213
          %2578 = vmatmul.f32.gmra.mxu0 %v2302
          %v2579 = vpop.f32.mrf.mxu0
          %v2580 = vadd.f32 %v2560, %v2579
          %2581 = vdwg.mxu0
          %2582 = vmatpush.msra.mxu0 %v2244
          %2583 = vmatpush.msra.mxu0 %v2243
          %2584 = vmatpush.msra.mxu0 %v2242
          %2585 = vmatpush.msra.mxu0 %v2241
          %2586 = vmatpush.msra.mxu0 %v2240
          %2587 = vmatpush.msra.mxu0 %v2239
          %2588 = vmatpush.msra.mxu0 %v2238
          %2589 = vmatpush.msra.mxu0 %v2237
          %2590 = vmatpush.msra.mxu0 %v2236
          %2591 = vmatpush.msra.mxu0 %v2235
          %2592 = vmatpush.msra.mxu0 %v2234
          %2593 = vmatpush.msra.mxu0 %v2233
          %2594 = vmatpush.msra.mxu0 %v2232
          %2595 = vmatpush.msra.mxu0 %v2231
          %2596 = vmatpush.msra.mxu0 %v2230
          %2597 = vmatpush.msra.mxu0 %v2229
          %2598 = vmatmul.f32.gmra.mxu0 %v2303
          %v2599 = vpop.f32.mrf.mxu0
          %v2600 = vadd.f32 %v2580, %v2599
          %2601 = vdwg.mxu0
          %2602 = vmatpush.msra.mxu0 %v2260
          %2603 = vmatpush.msra.mxu0 %v2259
          %2604 = vmatpush.msra.mxu0 %v2258
          %2605 = vmatpush.msra.mxu0 %v2257
          %2606 = vmatpush.msra.mxu0 %v2256
          %2607 = vmatpush.msra.mxu0 %v2255
          %2608 = vmatpush.msra.mxu0 %v2254
          %2609 = vmatpush.msra.mxu0 %v2253
          %2610 = vmatpush.msra.mxu0 %v2252
          %2611 = vmatpush.msra.mxu0 %v2251
          %2612 = vmatpush.msra.mxu0 %v2250
          %2613 = vmatpush.msra.mxu0 %v2249
          %2614 = vmatpush.msra.mxu0 %v2248
          %2615 = vmatpush.msra.mxu0 %v2247
          %2616 = vmatpush.msra.mxu0 %v2246
          %2617 = vmatpush.msra.mxu0 %v2245
          %2618 = vmatmul.f32.gmra.mxu0 %v2304
          %v2619 = vpop.f32.mrf.mxu0
          %v2620 = vadd.f32 %v2600, %v2619
          %2621 = vdwg.mxu0
          %2622 = vmatpush.msra.mxu0 %v2276
          %2623 = vmatpush.msra.mxu0 %v2275
          %2624 = vmatpush.msra.mxu0 %v2274
          %2625 = vmatpush.msra.mxu0 %v2273
          %2626 = vmatpush.msra.mxu0 %v2272
          %2627 = vmatpush.msra.mxu0 %v2271
          %2628 = vmatpush.msra.mxu0 %v2270
          %2629 = vmatpush.msra.mxu0 %v2269
          %2630 = vmatpush.msra.mxu0 %v2268
          %2631 = vmatpush.msra.mxu0 %v2267
          %2632 = vmatpush.msra.mxu0 %v2266
          %2633 = vmatpush.msra.mxu0 %v2265
          %2634 = vmatpush.msra.mxu0 %v2264
          %2635 = vmatpush.msra.mxu0 %v2263
          %2636 = vmatpush.msra.mxu0 %v2262
          %2637 = vmatpush.msra.mxu0 %v2261
          %2638 = vmatmul.f32.gmra.mxu0 %v2305
          %v2639 = vpop.f32.mrf.mxu0
          %v2640 = vadd.f32 %v2620, %v2639
          %2641 = vdwg.mxu0
          %vm2642 = vcmp.lt.s32.totalorder %v1601, 8
          %v2643 = vxor.u32 %v2640, 2147483648
          %v2644 = vmul.f32 %v2643, 1.442695
          %v2645 = vpow.pop %v2644
          %v2646 = vadd.f32 %v2645, 1.0
          %v2647 = vrcp.pop %v2646
          %v2648 = vmul.f32 %v2646, %v2647
          %v2649 = vsub.f32 1.0, %v2648
          %v2650 = vmul.f32 %v2647, %v2649
          %v2651 = vadd.f32 %v2647, %v2650
          %vm2652 = vweird.f32 %v2646
          %vm2653 = vweird.f32 %v2647
          %vm2654 = vmor %vm2652, %vm2653
          %v2655 = vsel %vm2654, %v2647, %v2651
          %v2656 = vand.u32 2147483647, %v2646
          %vm2657 = vcmp.eq.f32.partialorder %v2656, 8.507059e+37
          %v2658 = vand.u32 %v2646, 2147483648
          %v2659 = vor.u32 1.1754944e-38, %v2658
          %v2660 = vsel %vm2657, %v2659, %v2655
          %v2661 = vmul.f32 1.0, %v2660
          %v2662 = vsel %vm2642, %v2661, %v2640
          %2663 = vst [vmem:[%s5] sm:$0x3] %v2662
        $region89: #{backbone_nfc_id_forward.1} parent=76 // pred_fallthru
          _
        // Predicated region
        $region90: #{backbone_nfc_id_forward.1} parent=76 // pred_check
          %p2664 = pneg %p139
        $region91: #{backbone_nfc_id_forward.1} parent=76 // pred_check_branch
          %2666 = sbr.rel (%p2664) target = $region93
        $region92: #{backbone_nfc_id_forward.1} parent=76 // pred_region
          _
        $region93: #{backbone_nfc_id_forward.1} parent=76 // pred_fallthru
          _
        // Predicated region
        $region94: #{backbone_nfc_id_forward.1} parent=76 // pred_check
          %p2667 = pneg %p139
        $region95: #{backbone_nfc_id_forward.1} parent=76 // pred_check_branch
          %2669 = sbr.rel (%p2667) target = $region97
        $region96: #{backbone_nfc_id_forward.1} parent=76 // pred_region
          _
        $region97: #{backbone_nfc_id_forward.1} parent=76 // pred_fallthru
          _
      $region77: #{backbone_nfc_id_forward.1} parent=5 // pred_fallthru
        _
      %p2670 = scmp.le.s32.totalorder 2, %s11
      // Predicated region
      $region98: #{backbone_nfc_id_forward.1} parent=5 // pred_check
        %p2671 = pneg %p2670
      $region99: #{backbone_nfc_id_forward.1} parent=5 // pred_check_branch
        %2673 = sbr.rel (%p2671) target = $region101
      $region100: #{backbone_nfc_id_forward.1} parent=5 // pred_region
        %s2674 = ssub.s32 %s11, 2
      $region101: #{backbone_nfc_id_forward.1} parent=5 // pred_fallthru
        _
    $region6: #{backbone_nfc_id_forward.1} parent=1 // loop_footer
      %s15 = sadd.s32 1, %s11
    $region7: #{backbone_nfc_id_forward.1} parent=1 // loop_footer_branch
      %10 = sbr.rel target = $region3
    $region8: #{backbone_nfc_id_forward.1} parent=1 // loop_exit
      _

</llo_original>
